<compile_context>
chip_gen: v5e
topology: v5e:2x2
jax: 0.10.0
libtpu: 0.0.40
codegen_flags: <defaults>
</compile_context>

<pallas_src>
import functools

import jax
import jax.numpy as jnp
from jax.experimental import pallas as pl
from jax.experimental.pallas import tpu as pltpu

_VMEM = pl.BlockSpec(memory_space=pltpu.MemorySpace.VMEM)

_LANE = 128      # lane width: hidden / class dims are zero-padded to this
_TILE_M = 256    # batch rows per grid step (fills the 256-row MXU on v6e/v7x)


def _round_up(a, b):
    return (a + b - 1) // b * b


# ---------------------------------------------------------------------------
# One-time kernel: fuse NAC params  W = tanh(W_hat) * sigmoid(M_hat),
# transpose to (in, out), cast to bf16 and pack all three cells into one slab.
# ---------------------------------------------------------------------------
def _fuse_kernel(wh1_ref, mh1_ref, wh2_ref, mh2_ref, wh3_ref, mh3_ref,
                 slab_ref, *, d_in, hp):
    # Hats arrive zero-padded; padding fuses to exactly tanh(0)*sigmoid(0) = 0,
    # so padded hidden/class rows & columns of W are exactly zero.
    w1 = jnp.tanh(wh1_ref[...]) * jax.nn.sigmoid(mh1_ref[...])   # (hp, d_in)
    w2 = jnp.tanh(wh2_ref[...]) * jax.nn.sigmoid(mh2_ref[...])   # (hp, hp)
    w3 = jnp.tanh(wh3_ref[...]) * jax.nn.sigmoid(mh3_ref[...])   # (hp, hp)
    # In-kernel XLU transposes to (in, out) layout + bf16 cast, written into a
    # single contiguous slab so the inference path issues ONE weight DMA.
    slab_ref[0:d_in, :] = w1.T.astype(slab_ref.dtype)                 # (d_in, hp)
    slab_ref[d_in:d_in + hp, :] = w2.T.astype(slab_ref.dtype)         # (hp, hp)
    slab_ref[d_in + hp:d_in + 2 * hp, :] = w3.T.astype(slab_ref.dtype)  # (hp, hp)


def fuse_nac_params(params, *, lane=_LANE):
    """(W_hat, M_hat) per cell, torch (out, in) layout -> one fused bf16 slab.

    slab[0:d_in]             = W1^T   (d_in, hp)
    slab[d_in:d_in+hp]       = W2^T   (hp, hp)
    slab[d_in+hp:d_in+2*hp]  = W3^T   (hp, hp)
    with hidden/class dims zero-padded to hp = 128 lanes.  One-time cost; the
    per-call path only ever sees this slab.
    """
    (wh1, mh1), (wh2, mh2), (wh3, mh3) = params
    hidden, d_in = wh1.shape
    nclasses = wh3.shape[0]
    hp = _round_up(max(hidden, nclasses, 1), lane)
    assert d_in % 16 == 0, "in-features must be 16-aligned for the bf16 slab"

    def pad2(a, rows, cols):
        a = a.astype(jnp.float32)
        return jnp.pad(a, ((0, rows - a.shape[0]), (0, cols - a.shape[1])))

    fuse = functools.partial(_fuse_kernel, d_in=d_in, hp=hp)
    slab = pl.pallas_call(
        fuse,
        out_shape=jax.ShapeDtypeStruct((d_in + 2 * hp, hp), jnp.bfloat16),
        in_specs=[_VMEM] * 6,
        out_specs=_VMEM,
    )(pad2(wh1, hp, d_in), pad2(mh1, hp, d_in),
      pad2(wh2, hp, hp), pad2(mh2, hp, hp),
      pad2(wh3, hp, hp), pad2(mh3, hp, hp))
    return slab, (d_in, hidden, nclasses, hp)


# ---------------------------------------------------------------------------
# Batched inference kernel: one row-tile per grid step, weights resident.
# ---------------------------------------------------------------------------
def _infer_kernel(x_ref, slab_ref, probs_ref, lbl_ref, *, d_in, hp, nclasses):
    # Static views into the resident bf16 weight slab (zero-cost slices).
    w1 = slab_ref[0:d_in, :]                     # (d_in, hp) bf16
    w2 = slab_ref[d_in:d_in + hp, :]             # (hp, hp)   bf16
    w3 = slab_ref[d_in + hp:d_in + 2 * hp, :]    # (hp, hp)   bf16

    # Only the MXU operands are bf16; accumulation + sigmoids stay f32.
    xb = x_ref[...].astype(jnp.bfloat16)                               # (TM, d_in)
    h1 = jnp.dot(xb, w1, preferred_element_type=jnp.float32)           # (TM, hp)
    h2 = jax.nn.sigmoid(
        jnp.dot(h1.astype(jnp.bfloat16), w2,
                preferred_element_type=jnp.float32))                   # (TM, hp)
    out = jax.nn.sigmoid(
        jnp.dot(h2.astype(jnp.bfloat16), w3,
                preferred_element_type=jnp.float32))                   # (TM, hp)

    probs_ref[...] = out                                  # lane-dense (TM, 128)

    # Vectorized first-max argmax over the REAL classes only (padded class
    # lanes carry sigmoid(0)=0.5 and must be masked out).
    idx = jax.lax.broadcasted_iota(jnp.int32, out.shape, 1)
    masked = jnp.where(idx < nclasses, out, -1.0)          # sigmoid > 0 > -1
    row_max = jnp.max(masked, axis=-1, keepdims=True)
    cand = jnp.where(masked == row_max, idx, jnp.int32(hp))
    lbl_ref[...] = jnp.min(cand, axis=-1, keepdims=True)   # (TM, 1) int32


def nac_autoclassify_batch(x, fused, *, tile_m=_TILE_M):
    """x: (B, *input_shape).  Returns (labels (B,), probs (B, nclasses))."""
    slab, (d_in, _hidden, nclasses, hp) = fused
    b = x.shape[0]
    xf = x.reshape(b, -1).astype(jnp.float32)
    assert xf.shape[1] == d_in, (xf.shape, d_in)

    # Row-tile size: full MXU tile when possible, 8-row aligned otherwise.
    tm = tile_m if b >= tile_m else _round_up(b, 8)
    bp = _round_up(b, tm)
    if bp != b:
        xf = jnp.pad(xf, ((0, bp - b), (0, 0)))
    n_tiles = bp // tm

    kernel = functools.partial(_infer_kernel, d_in=d_in, hp=hp, nclasses=nclasses)
    probs, lbl = pl.pallas_call(
        kernel,
        out_shape=(
            jax.ShapeDtypeStruct((bp, hp), jnp.float32),   # lane-dense probs
            jax.ShapeDtypeStruct((bp, 1), jnp.int32),      # per-row label
        ),
        grid_spec=pltpu.PrefetchScalarGridSpec(
            num_scalar_prefetch=0,
            grid=(n_tiles,),
            in_specs=[
                pl.BlockSpec((tm, d_in), lambda i: (i, 0)),            # row tile
                pl.BlockSpec((d_in + 2 * hp, hp), lambda i: (0, 0)),   # resident weights
            ],
            out_specs=(
                pl.BlockSpec((tm, hp), lambda i: (i, 0)),
                pl.BlockSpec((tm, 1), lambda i: (i, 0)),
            ),
        ),
        compiler_params=pltpu.CompilerParams(
            dimension_semantics=("parallel",),   # v7x: 2 TCs split the row tiles
        ),
    )(xf, slab)

    return lbl[:b, 0], probs[:b, :nclasses]


def nac_autoclassify(x, fused):
    """Module-equivalent forward for ONE sample: returns (label, probs)."""
    lbl, probs = nac_autoclassify_batch(x[None], fused)
    return lbl[0], probs[0]


# ---------------------------------------------------------------------------
# Params / reference / test harness.
# ---------------------------------------------------------------------------
def init_params(key, d_in, hidden, nclasses):
    """Deterministic NAC parameter init (W_hat, M_hat per cell, torch (out, in))."""
    keys = jax.random.split(key, 6)

    def u(k, shape):
        return jax.random.uniform(k, shape, jnp.float32, minval=-0.5, maxval=0.5)

    wh1, mh1 = u(keys[0], (hidden, d_in)), u(keys[1], (hidden, d_in))
    wh2, mh2 = u(keys[2], (hidden, hidden)), u(keys[3], (hidden, hidden))
    wh3, mh3 = u(keys[4], (nclasses, hidden)), u(keys[5], (nclasses, hidden))
    return ((wh1, mh1), (wh2, mh2), (wh3, mh3))


def reference(x, params, *, bf16_mxu=False):
    """Pure-JAX reference.  bf16_mxu=True mirrors the kernel's numerics
    (bf16 MXU operands, f32 accumulation); False is the pure-f32 module."""
    (wh1, mh1), (wh2, mh2), (wh3, mh3) = params
    fuse = lambda wh, mh: jnp.tanh(wh) * jax.nn.sigmoid(mh)
    w1, w2, w3 = fuse(wh1, mh1), fuse(wh2, mh2), fuse(wh3, mh3)
    xr = x.reshape(x.shape[0], -1).astype(jnp.float32)

    if bf16_mxu:
        def dot(a, w):
            return jnp.dot(a.astype(jnp.bfloat16), w.T.astype(jnp.bfloat16),
                           preferred_element_type=jnp.float32)
    else:
        def dot(a, w):
            return jnp.dot(a, w.T, precision=jax.lax.Precision.HIGHEST)

    h1 = dot(xr, w1)
    h2 = jax.nn.sigmoid(dot(h1, w2))
    out = jax.nn.sigmoid(dot(h2, w3))
    return jnp.argmax(out, axis=-1), out


if __name__ == "__main__":
    # Small, module-consistent shapes: input_shape=(4, 8, 8) -> 256 features,
    # hidden_shape=(8, 8) -> 64 features, nclasses=10, batch=512 (2 row tiles).
    input_shape = (4, 8, 8)
    hidden_shape = (8, 8)
    nclasses = 10
    batch = 512

    d_in = 1
    for s in input_shape:
        d_in *= s
    hidden = hidden_shape[0] * hidden_shape[1]

    key = jax.random.PRNGKey(0)
    kx, kp = jax.random.split(key)
    x = jax.random.normal(kx, (batch,) + input_shape, jnp.float32)
    params = init_params(kp, d_in, hidden, nclasses)

    # One-time: fuse + transpose + pad + coalesce the NAC weights (Pallas).
    slab, meta = fuse_nac_params(params)
    slab = jax.block_until_ready(slab)
    fused = (slab, meta)

    # Batched inference (Pallas).
    lbl, probs = nac_autoclassify_batch(x, fused)
    lbl, probs = jax.block_until_ready((lbl, probs))

    # (1) Tight check against a reference using the SAME numerics as the
    #     kernel (bf16 MXU operands, f32 accumulation / sigmoids).
    ref_lbl, ref_probs = reference(x, params, bf16_mxu=True)
    assert probs.shape == (batch, nclasses)
    assert bool(jnp.allclose(probs, ref_probs, atol=2e-3)), \
        float(jnp.max(jnp.abs(probs - ref_probs)))
    top2 = jnp.sort(ref_probs, axis=-1)[:, -2:]
    gap = top2[:, 1] - top2[:, 0]                       # top-1 minus top-2 prob
    mismatch = lbl != ref_lbl
    assert not bool(jnp.any(mismatch & (gap > 5e-3)))   # only near-ties may flip
    assert float(jnp.mean(mismatch.astype(jnp.float32))) < 0.02

    # (2) Loose sanity check against the pure-f32 module semantics (bf16
    #     weight/operand rounding only perturbs probabilities slightly).
    _, f32_probs = reference(x, params, bf16_mxu=False)
    assert bool(jnp.allclose(probs, f32_probs, atol=5e-2))

    # (3) Module-equivalent single-sample forward agrees with the batched path.
    lbl0, probs0 = nac_autoclassify(x[0], fused)
    lbl0 = jax.block_until_ready(lbl0)
    assert int(lbl0) == int(lbl[0])
    assert bool(jnp.allclose(probs0, probs[0], atol=1e-5))

    print("KERNEL_OK")
</pallas_src>

<mosaic_0001>
module attributes {stable_mosaic.version = 11 : i64} {
  func.func @_fuse_kernel(%arg0: memref<128x256xf32, #tpu.memory_space<vmem>>, %arg1: memref<128x256xf32, #tpu.memory_space<vmem>>, %arg2: memref<128x128xf32, #tpu.memory_space<vmem>>, %arg3: memref<128x128xf32, #tpu.memory_space<vmem>>, %arg4: memref<128x128xf32, #tpu.memory_space<vmem>>, %arg5: memref<128x128xf32, #tpu.memory_space<vmem>>, %arg6: memref<512x128xbf16, #tpu.memory_space<vmem>>) attributes {dimension_semantics = [], scalar_prefetch = 0 : i64, scratch_operands = 0 : i64, tpu.core_type = #tpu.core_type<tc>} {
    %c0 = arith.constant 0 : index
    %c0_0 = arith.constant 0 : index
    %0 = vector.load %arg0[%c0, %c0_0] : memref<128x256xf32, #tpu.memory_space<vmem>>, vector<128x256xf32>
    %1 = math.tanh %0 : vector<128x256xf32>
    %c0_1 = arith.constant 0 : index
    %c0_2 = arith.constant 0 : index
    %2 = vector.load %arg1[%c0_1, %c0_2] : memref<128x256xf32, #tpu.memory_space<vmem>>, vector<128x256xf32>
    %3 = arith.negf %2 : vector<128x256xf32>
    %4 = math.exp %3 : vector<128x256xf32>
    %cst = arith.constant 1.000000e+00 : f32
    %5 = vector.broadcast %cst : f32 to vector<128x256xf32>
    %6 = arith.addf %5, %4 : vector<128x256xf32>
    %7 = arith.divf %5, %6 : vector<128x256xf32>
    %8 = arith.mulf %1, %7 : vector<128x256xf32>
    %c0_3 = arith.constant 0 : index
    %c0_4 = arith.constant 0 : index
    %9 = vector.load %arg2[%c0_3, %c0_4] : memref<128x128xf32, #tpu.memory_space<vmem>>, vector<128x128xf32>
    %10 = math.tanh %9 : vector<128x128xf32>
    %c0_5 = arith.constant 0 : index
    %c0_6 = arith.constant 0 : index
    %11 = vector.load %arg3[%c0_5, %c0_6] : memref<128x128xf32, #tpu.memory_space<vmem>>, vector<128x128xf32>
    %12 = arith.negf %11 : vector<128x128xf32>
    %13 = math.exp %12 : vector<128x128xf32>
    %cst_7 = arith.constant 1.000000e+00 : f32
    %14 = vector.broadcast %cst_7 : f32 to vector<128x128xf32>
    %15 = arith.addf %14, %13 : vector<128x128xf32>
    %16 = arith.divf %14, %15 : vector<128x128xf32>
    %17 = arith.mulf %10, %16 : vector<128x128xf32>
    %c0_8 = arith.constant 0 : index
    %c0_9 = arith.constant 0 : index
    %18 = vector.load %arg4[%c0_8, %c0_9] : memref<128x128xf32, #tpu.memory_space<vmem>>, vector<128x128xf32>
    %19 = math.tanh %18 : vector<128x128xf32>
    %c0_10 = arith.constant 0 : index
    %c0_11 = arith.constant 0 : index
    %20 = vector.load %arg5[%c0_10, %c0_11] : memref<128x128xf32, #tpu.memory_space<vmem>>, vector<128x128xf32>
    %21 = arith.negf %20 : vector<128x128xf32>
    %22 = math.exp %21 : vector<128x128xf32>
    %cst_12 = arith.constant 1.000000e+00 : f32
    %23 = vector.broadcast %cst_12 : f32 to vector<128x128xf32>
    %24 = arith.addf %23, %22 : vector<128x128xf32>
    %25 = arith.divf %23, %24 : vector<128x128xf32>
    %26 = arith.mulf %19, %25 : vector<128x128xf32>
    %27 = tpu.transpose %8, [1, 0] : vector<128x256xf32> -> vector<256x128xf32>
    %28 = arith.truncf %27 : vector<256x128xf32> to vector<256x128xbf16>
    %c0_13 = arith.constant 0 : index
    %c0_14 = arith.constant 0 : index
    %29 = vector.load %arg6[%c0_13, %c0_14] : memref<512x128xbf16, #tpu.memory_space<vmem>>, vector<256x128xbf16>
    tpu.vector_store %arg6[%c0_13, %c0_14], %28 {strides = array<i32>} : memref<512x128xbf16, #tpu.memory_space<vmem>>, vector<256x128xbf16>,
    %30 = tpu.transpose %17, [1, 0] : vector<128x128xf32> -> vector<128x128xf32>
    %31 = arith.truncf %30 : vector<128x128xf32> to vector<128x128xbf16>
    %c256 = arith.constant 256 : index
    %c0_15 = arith.constant 0 : index
    %32 = vector.load %arg6[%c256, %c0_15] : memref<512x128xbf16, #tpu.memory_space<vmem>>, vector<128x128xbf16>
    tpu.vector_store %arg6[%c256, %c0_15], %31 {strides = array<i32>} : memref<512x128xbf16, #tpu.memory_space<vmem>>, vector<128x128xbf16>,
    %33 = tpu.transpose %26, [1, 0] : vector<128x128xf32> -> vector<128x128xf32>
    %34 = arith.truncf %33 : vector<128x128xf32> to vector<128x128xbf16>
    %c384 = arith.constant 384 : index
    %c0_16 = arith.constant 0 : index
    %35 = vector.load %arg6[%c384, %c0_16] : memref<512x128xbf16, #tpu.memory_space<vmem>>, vector<128x128xbf16>
    tpu.vector_store %arg6[%c384, %c0_16], %34 {strides = array<i32>} : memref<512x128xbf16, #tpu.memory_space<vmem>>, vector<128x128xbf16>,
    return
  }
}

</mosaic_0001>

<llo_original>
// kernel: tpu_custom_call.1
$region0: #{tpu_custom_call.1}
  #allocation0 [shape = 'u32[]', space=smem, size = 0x4, offset = 0x4, fixed_abs, tag = 'smem constant byte address 0x4 - core index']
  #allocation1 [shape = 'u32[72,128]{1,0:T(1,128)}', space=vmem, size = 0x9000, scoped, tag = 'internal scratch']
  %s0 = inlined_call_operand.hbm [shape: f32[128,256], index: 0, kind: input, shape index: {}]
  %s1 = inlined_call_operand.hbm [shape: f32[128,256], index: 1, kind: input, shape index: {}]
  %s2 = inlined_call_operand.hbm [shape: f32[128,128], index: 2, kind: input, shape index: {}]
  %s3 = inlined_call_operand.hbm [shape: f32[128,128], index: 3, kind: input, shape index: {}]
  %s4 = inlined_call_operand.hbm [shape: f32[128,128], index: 4, kind: input, shape index: {}]
  %s5 = inlined_call_operand.hbm [shape: f32[128,128], index: 5, kind: input, shape index: {}]
  %s6 = inlined_call_operand.hbm [shape: bf16[512,128], index: 6, kind: output, shape index: {}]
  %s7 = sld [smem:[#allocation0]]
  $region58: #{tpu_custom_call.1} parent=0
    _
  %s9 = ssub.s32 1, %s7
  %s10 = scalar_select 0, %s9, %s7
  $region1: #{tpu_custom_call.1} parent=0
    #allocation2 [shape = 'u8[131072]{0}', space=vmem, size = 0x20000, scoped, tag = 'input window, operand 0, single buffered']
    #allocation3 [shape = 's32[1]{0}', space=sflag, size = 0x4, scoped, tag = 'scoped memory for tpu_custom_call.1']
    #allocation4 [shape = 's32[1]{0}', space=sflag, size = 0x4, scoped, tag = 'scoped memory for tpu_custom_call.1']
    #allocation5 [shape = 'u8[131072]{0}', space=vmem, size = 0x20000, scoped, tag = 'input window, operand 1, single buffered']
    #allocation6 [shape = 's32[1]{0}', space=sflag, size = 0x4, scoped, tag = 'scoped memory for tpu_custom_call.1']
    #allocation7 [shape = 'u8[65536]{0}', space=vmem, size = 0x10000, scoped, tag = 'input window, operand 2, single buffered']
    #allocation8 [shape = 'u8[65536]{0}', space=vmem, size = 0x10000, scoped, tag = 'input window, operand 3, single buffered']
    #allocation9 [shape = 's32[1]{0}', space=sflag, size = 0x4, scoped, tag = 'scoped memory for tpu_custom_call.1']
    #allocation10 [shape = 'u8[65536]{0}', space=vmem, size = 0x10000, scoped, tag = 'input window, operand 4, single buffered']
    #allocation11 [shape = 'u8[65536]{0}', space=vmem, size = 0x10000, scoped, tag = 'input window, operand 5, single buffered']
    #allocation12 [shape = 's32[1]{0}', space=sflag, size = 0x4, scoped, tag = 'scoped memory for tpu_custom_call.1']
    #allocation13 [shape = 'u8[131072]{0}', space=vmem, size = 0x20000, scoped, tag = 'output window, operand 0, single buffered']
    %11 = vsyncpa [#allocation3], 0
    %12 = vsyncpa [#allocation6], 0
    %13 = vsyncpa [#allocation9], 0
    %14 = vsyncpa [#allocation12], 0
    %15 = vsyncpa [#allocation4], 0
    // Predicated region
    $region2: #{tpu_custom_call.1} parent=1 // pred_check
      _
    $region3: #{tpu_custom_call.1} parent=1 // pred_check_branch
      %17 = sbr.rel (0) target = $region5
    $region4: #{tpu_custom_call.1} parent=1 // pred_region
      %19 = vsyncadd [#allocation3], 0
      %s20 = sshll.u32 %s0, 4
      %s21 = int_to_ptr.hbm [resolvable:$true] %s20
      %s22 = sshll.u32 [#allocation2], 4
      %s23 = int_to_ptr.vmem [resolvable:$true] %s22
      %28 = dma.hbm_to_vmem [thread:$0]  %s21, 4096, %s23, [#allocation3], 256, 256, 16
    $region5: #{tpu_custom_call.1} parent=1 // pred_fallthru
      _
    // Predicated region
    $region6: #{tpu_custom_call.1} parent=1 // pred_check
      _
    $region7: #{tpu_custom_call.1} parent=1 // pred_check_branch
      %30 = sbr.rel (0) target = $region9
    $region8: #{tpu_custom_call.1} parent=1 // pred_region
      %32 = vsyncadd [#allocation6], 0
      %s33 = sshll.u32 %s1, 4
      %s34 = int_to_ptr.hbm [resolvable:$true] %s33
      %s35 = sshll.u32 [#allocation5], 4
      %s36 = int_to_ptr.vmem [resolvable:$true] %s35
      %41 = dma.hbm_to_vmem [thread:$0]  %s34, 4096, %s36, [#allocation6], 256, 256, 16
    $region9: #{tpu_custom_call.1} parent=1 // pred_fallthru
      _
    // Predicated region
    $region10: #{tpu_custom_call.1} parent=1 // pred_check
      _
    $region11: #{tpu_custom_call.1} parent=1 // pred_check_branch
      %43 = sbr.rel (0) target = $region13
    $region12: #{tpu_custom_call.1} parent=1 // pred_region
      %45 = vsyncadd [#allocation6], 0
      %s46 = sshll.u32 %s2, 4
      %s47 = int_to_ptr.hbm [resolvable:$true] %s46
      %s48 = sshll.u32 [#allocation7], 4
      %s49 = int_to_ptr.vmem [resolvable:$true] %s48
      %54 = dma.hbm_to_vmem [thread:$0]  %s47, 2048, %s49, [#allocation6], 128, 128, 8
    $region13: #{tpu_custom_call.1} parent=1 // pred_fallthru
      _
    // Predicated region
    $region14: #{tpu_custom_call.1} parent=1 // pred_check
      _
    $region15: #{tpu_custom_call.1} parent=1 // pred_check_branch
      %56 = sbr.rel (0) target = $region17
    $region16: #{tpu_custom_call.1} parent=1 // pred_region
      %58 = vsyncadd [#allocation9], 0
      %s59 = sshll.u32 %s3, 4
      %s60 = int_to_ptr.hbm [resolvable:$true] %s59
      %s61 = sshll.u32 [#allocation8], 4
      %s62 = int_to_ptr.vmem [resolvable:$true] %s61
      %67 = dma.hbm_to_vmem [thread:$0]  %s60, 2048, %s62, [#allocation9], 128, 128, 8
    $region17: #{tpu_custom_call.1} parent=1 // pred_fallthru
      _
    // Predicated region
    $region18: #{tpu_custom_call.1} parent=1 // pred_check
      _
    $region19: #{tpu_custom_call.1} parent=1 // pred_check_branch
      %69 = sbr.rel (0) target = $region21
    $region20: #{tpu_custom_call.1} parent=1 // pred_region
      %71 = vsyncadd [#allocation9], 0
      %s72 = sshll.u32 %s4, 4
      %s73 = int_to_ptr.hbm [resolvable:$true] %s72
      %s74 = sshll.u32 [#allocation10], 4
      %s75 = int_to_ptr.vmem [resolvable:$true] %s74
      %80 = dma.hbm_to_vmem [thread:$0]  %s73, 2048, %s75, [#allocation9], 128, 128, 8
    $region21: #{tpu_custom_call.1} parent=1 // pred_fallthru
      _
    // Predicated region
    $region22: #{tpu_custom_call.1} parent=1 // pred_check
      _
    $region23: #{tpu_custom_call.1} parent=1 // pred_check_branch
      %82 = sbr.rel (0) target = $region25
    $region24: #{tpu_custom_call.1} parent=1 // pred_region
      %84 = vsyncadd [#allocation12], 0
      %s85 = sshll.u32 %s5, 4
      %s86 = int_to_ptr.hbm [resolvable:$true] %s85
      %s87 = sshll.u32 [#allocation11], 4
      %s88 = int_to_ptr.vmem [resolvable:$true] %s87
      %93 = dma.hbm_to_vmem [thread:$0]  %s86, 2048, %s88, [#allocation12], 128, 128, 8
    $region25: #{tpu_custom_call.1} parent=1 // pred_fallthru
      _
    // Predicated region
    $region26: #{tpu_custom_call.1} parent=1 // pred_check
      _
    $region27: #{tpu_custom_call.1} parent=1 // pred_check_branch
      %95 = sbr.rel (0) target = $region29
    $region28: #{tpu_custom_call.1} parent=1 // pred_region
      %97 = dma.done [#allocation3], 4096
    $region29: #{tpu_custom_call.1} parent=1 // pred_fallthru
      _
    // Predicated region
    $region30: #{tpu_custom_call.1} parent=1 // pred_check
      _
    $region31: #{tpu_custom_call.1} parent=1 // pred_check_branch
      %99 = sbr.rel (0) target = $region33
    $region32: #{tpu_custom_call.1} parent=1 // pred_region
      %101 = dma.done [#allocation6], 4096
    $region33: #{tpu_custom_call.1} parent=1 // pred_fallthru
      _
    // Predicated region
    $region34: #{tpu_custom_call.1} parent=1 // pred_check
      _
    $region35: #{tpu_custom_call.1} parent=1 // pred_check_branch
      %103 = sbr.rel (0) target = $region37
    $region36: #{tpu_custom_call.1} parent=1 // pred_region
      %105 = dma.done [#allocation6], 2048
    $region37: #{tpu_custom_call.1} parent=1 // pred_fallthru
      _
    // Predicated region
    $region38: #{tpu_custom_call.1} parent=1 // pred_check
      _
    $region39: #{tpu_custom_call.1} parent=1 // pred_check_branch
      %107 = sbr.rel (0) target = $region41
    $region40: #{tpu_custom_call.1} parent=1 // pred_region
      %109 = dma.done [#allocation9], 2048
    $region41: #{tpu_custom_call.1} parent=1 // pred_fallthru
      _
    // Predicated region
    $region42: #{tpu_custom_call.1} parent=1 // pred_check
      _
    $region43: #{tpu_custom_call.1} parent=1 // pred_check_branch
      %111 = sbr.rel (0) target = $region45
    $region44: #{tpu_custom_call.1} parent=1 // pred_region
      %113 = dma.done [#allocation9], 2048
    $region45: #{tpu_custom_call.1} parent=1 // pred_fallthru
      _
    // Predicated region
    $region46: #{tpu_custom_call.1} parent=1 // pred_check
      _
    $region47: #{tpu_custom_call.1} parent=1 // pred_check_branch
      %115 = sbr.rel (0) target = $region49
    $region48: #{tpu_custom_call.1} parent=1 // pred_region
      %117 = dma.done [#allocation12], 2048
    $region49: #{tpu_custom_call.1} parent=1 // pred_fallthru
      _
    %v118 = vld [vmem:[#allocation2] sm:$0xff]
    %v119 = vld [vmem:[#allocation2 + $0x8] sm:$0xff]
    %v120 = vld [vmem:[#allocation2 + $0x10] sm:$0xff]
    %v121 = vld [vmem:[#allocation2 + $0x18] sm:$0xff]
    %v122 = vld [vmem:[#allocation2 + $0x20] sm:$0xff]
    %v123 = vld [vmem:[#allocation2 + $0x28] sm:$0xff]
    %v124 = vld [vmem:[#allocation2 + $0x30] sm:$0xff]
    %v125 = vld [vmem:[#allocation2 + $0x38] sm:$0xff]
    %v126 = vld [vmem:[#allocation2 + $0x40] sm:$0xff]
    %v127 = vld [vmem:[#allocation2 + $0x48] sm:$0xff]
    %v128 = vld [vmem:[#allocation2 + $0x50] sm:$0xff]
    %v129 = vld [vmem:[#allocation2 + $0x58] sm:$0xff]
    %v130 = vld [vmem:[#allocation2 + $0x60] sm:$0xff]
    %v131 = vld [vmem:[#allocation2 + $0x68] sm:$0xff]
    %v132 = vld [vmem:[#allocation2 + $0x70] sm:$0xff]
    %v133 = vld [vmem:[#allocation2 + $0x78] sm:$0xff]
    %v134 = vld [vmem:[#allocation2 + $0x80] sm:$0xff]
    %v135 = vld [vmem:[#allocation2 + $0x88] sm:$0xff]
    %v136 = vld [vmem:[#allocation2 + $0x90] sm:$0xff]
    %v137 = vld [vmem:[#allocation2 + $0x98] sm:$0xff]
    %v138 = vld [vmem:[#allocation2 + $0xa0] sm:$0xff]
    %v139 = vld [vmem:[#allocation2 + $0xa8] sm:$0xff]
    %v140 = vld [vmem:[#allocation2 + $0xb0] sm:$0xff]
    %v141 = vld [vmem:[#allocation2 + $0xb8] sm:$0xff]
    %v142 = vld [vmem:[#allocation2 + $0xc0] sm:$0xff]
    %v143 = vld [vmem:[#allocation2 + $0xc8] sm:$0xff]
    %v144 = vld [vmem:[#allocation2 + $0xd0] sm:$0xff]
    %v145 = vld [vmem:[#allocation2 + $0xd8] sm:$0xff]
    %v146 = vld [vmem:[#allocation2 + $0xe0] sm:$0xff]
    %v147 = vld [vmem:[#allocation2 + $0xe8] sm:$0xff]
    %v148 = vld [vmem:[#allocation2 + $0xf0] sm:$0xff]
    %v149 = vld [vmem:[#allocation2 + $0xf8] sm:$0xff]
    %v150 = vtanh.pop %v118
    %v151 = vtanh.pop %v119
    %v152 = vtanh.pop %v120
    %v153 = vtanh.pop %v121
    %v154 = vtanh.pop %v122
    %v155 = vtanh.pop %v123
    %v156 = vtanh.pop %v124
    %v157 = vtanh.pop %v125
    %v158 = vtanh.pop %v126
    %v159 = vtanh.pop %v127
    %v160 = vtanh.pop %v128
    %v161 = vtanh.pop %v129
    %v162 = vtanh.pop %v130
    %v163 = vtanh.pop %v131
    %v164 = vtanh.pop %v132
    %v165 = vtanh.pop %v133
    %v166 = vtanh.pop %v134
    %v167 = vtanh.pop %v135
    %v168 = vtanh.pop %v136
    %v169 = vtanh.pop %v137
    %v170 = vtanh.pop %v138
    %v171 = vtanh.pop %v139
    %v172 = vtanh.pop %v140
    %v173 = vtanh.pop %v141
    %v174 = vtanh.pop %v142
    %v175 = vtanh.pop %v143
    %v176 = vtanh.pop %v144
    %v177 = vtanh.pop %v145
    %v178 = vtanh.pop %v146
    %v179 = vtanh.pop %v147
    %v180 = vtanh.pop %v148
    %v181 = vtanh.pop %v149
    %v182 = vld [vmem:[#allocation5] sm:$0xff]
    %v183 = vld [vmem:[#allocation5 + $0x8] sm:$0xff]
    %v184 = vld [vmem:[#allocation5 + $0x10] sm:$0xff]
    %v185 = vld [vmem:[#allocation5 + $0x18] sm:$0xff]
    %v186 = vld [vmem:[#allocation5 + $0x20] sm:$0xff]
    %v187 = vld [vmem:[#allocation5 + $0x28] sm:$0xff]
    %v188 = vld [vmem:[#allocation5 + $0x30] sm:$0xff]
    %v189 = vld [vmem:[#allocation5 + $0x38] sm:$0xff]
    %v190 = vld [vmem:[#allocation5 + $0x40] sm:$0xff]
    %v191 = vld [vmem:[#allocation5 + $0x48] sm:$0xff]
    %v192 = vld [vmem:[#allocation5 + $0x50] sm:$0xff]
    %v193 = vld [vmem:[#allocation5 + $0x58] sm:$0xff]
    %v194 = vld [vmem:[#allocation5 + $0x60] sm:$0xff]
    %v195 = vld [vmem:[#allocation5 + $0x68] sm:$0xff]
    %v196 = vld [vmem:[#allocation5 + $0x70] sm:$0xff]
    %v197 = vld [vmem:[#allocation5 + $0x78] sm:$0xff]
    %v198 = vld [vmem:[#allocation5 + $0x80] sm:$0xff]
    %v199 = vld [vmem:[#allocation5 + $0x88] sm:$0xff]
    %v200 = vld [vmem:[#allocation5 + $0x90] sm:$0xff]
    %v201 = vld [vmem:[#allocation5 + $0x98] sm:$0xff]
    %v202 = vld [vmem:[#allocation5 + $0xa0] sm:$0xff]
    %v203 = vld [vmem:[#allocation5 + $0xa8] sm:$0xff]
    %v204 = vld [vmem:[#allocation5 + $0xb0] sm:$0xff]
    %v205 = vld [vmem:[#allocation5 + $0xb8] sm:$0xff]
    %v206 = vld [vmem:[#allocation5 + $0xc0] sm:$0xff]
    %v207 = vld [vmem:[#allocation5 + $0xc8] sm:$0xff]
    %v208 = vld [vmem:[#allocation5 + $0xd0] sm:$0xff]
    %v209 = vld [vmem:[#allocation5 + $0xd8] sm:$0xff]
    %v210 = vld [vmem:[#allocation5 + $0xe0] sm:$0xff]
    %v211 = vld [vmem:[#allocation5 + $0xe8] sm:$0xff]
    %v212 = vld [vmem:[#allocation5 + $0xf0] sm:$0xff]
    %v213 = vld [vmem:[#allocation5 + $0xf8] sm:$0xff]
    %v214 = vxor.u32 %v182, 2147483648
    %v215 = vxor.u32 %v183, 2147483648
    %v216 = vxor.u32 %v184, 2147483648
    %v217 = vxor.u32 %v185, 2147483648
    %v218 = vxor.u32 %v186, 2147483648
    %v219 = vxor.u32 %v187, 2147483648
    %v220 = vxor.u32 %v188, 2147483648
    %v221 = vxor.u32 %v189, 2147483648
    %v222 = vxor.u32 %v190, 2147483648
    %v223 = vxor.u32 %v191, 2147483648
    %v224 = vxor.u32 %v192, 2147483648
    %v225 = vxor.u32 %v193, 2147483648
    %v226 = vxor.u32 %v194, 2147483648
    %v227 = vxor.u32 %v195, 2147483648
    %v228 = vxor.u32 %v196, 2147483648
    %v229 = vxor.u32 %v197, 2147483648
    %v230 = vxor.u32 %v198, 2147483648
    %v231 = vxor.u32 %v199, 2147483648
    %v232 = vxor.u32 %v200, 2147483648
    %v233 = vxor.u32 %v201, 2147483648
    %v234 = vxor.u32 %v202, 2147483648
    %v235 = vxor.u32 %v203, 2147483648
    %v236 = vxor.u32 %v204, 2147483648
    %v237 = vxor.u32 %v205, 2147483648
    %v238 = vxor.u32 %v206, 2147483648
    %v239 = vxor.u32 %v207, 2147483648
    %v240 = vxor.u32 %v208, 2147483648
    %v241 = vxor.u32 %v209, 2147483648
    %v242 = vxor.u32 %v210, 2147483648
    %v243 = vxor.u32 %v211, 2147483648
    %v244 = vxor.u32 %v212, 2147483648
    %v245 = vxor.u32 %v213, 2147483648
    %v246 = vmul.f32 %v214, 1.442695
    %v247 = vpow.pop %v246
    %v248 = vmul.f32 %v215, 1.442695
    %v249 = vpow.pop %v248
    %v250 = vmul.f32 %v216, 1.442695
    %v251 = vpow.pop %v250
    %v252 = vmul.f32 %v217, 1.442695
    %v253 = vpow.pop %v252
    %v254 = vmul.f32 %v218, 1.442695
    %v255 = vpow.pop %v254
    %v256 = vmul.f32 %v219, 1.442695
    %v257 = vpow.pop %v256
    %v258 = vmul.f32 %v220, 1.442695
    %v259 = vpow.pop %v258
    %v260 = vmul.f32 %v221, 1.442695
    %v261 = vpow.pop %v260
    %v262 = vmul.f32 %v222, 1.442695
    %v263 = vpow.pop %v262
    %v264 = vmul.f32 %v223, 1.442695
    %v265 = vpow.pop %v264
    %v266 = vmul.f32 %v224, 1.442695
    %v267 = vpow.pop %v266
    %v268 = vmul.f32 %v225, 1.442695
    %v269 = vpow.pop %v268
    %v270 = vmul.f32 %v226, 1.442695
    %v271 = vpow.pop %v270
    %v272 = vmul.f32 %v227, 1.442695
    %v273 = vpow.pop %v272
    %v274 = vmul.f32 %v228, 1.442695
    %v275 = vpow.pop %v274
    %v276 = vmul.f32 %v229, 1.442695
    %v277 = vpow.pop %v276
    %v278 = vmul.f32 %v230, 1.442695
    %v279 = vpow.pop %v278
    %v280 = vmul.f32 %v231, 1.442695
    %v281 = vpow.pop %v280
    %v282 = vmul.f32 %v232, 1.442695
    %v283 = vpow.pop %v282
    %v284 = vmul.f32 %v233, 1.442695
    %v285 = vpow.pop %v284
    %v286 = vmul.f32 %v234, 1.442695
    %v287 = vpow.pop %v286
    %v288 = vmul.f32 %v235, 1.442695
    %v289 = vpow.pop %v288
    %v290 = vmul.f32 %v236, 1.442695
    %v291 = vpow.pop %v290
    %v292 = vmul.f32 %v237, 1.442695
    %v293 = vpow.pop %v292
    %v294 = vmul.f32 %v238, 1.442695
    %v295 = vpow.pop %v294
    %v296 = vmul.f32 %v239, 1.442695
    %v297 = vpow.pop %v296
    %v298 = vmul.f32 %v240, 1.442695
    %v299 = vpow.pop %v298
    %v300 = vmul.f32 %v241, 1.442695
    %v301 = vpow.pop %v300
    %v302 = vmul.f32 %v242, 1.442695
    %v303 = vpow.pop %v302
    %v304 = vmul.f32 %v243, 1.442695
    %v305 = vpow.pop %v304
    %v306 = vmul.f32 %v244, 1.442695
    %v307 = vpow.pop %v306
    %v308 = vmul.f32 %v245, 1.442695
    %v309 = vpow.pop %v308
    %v310 = vadd.f32 %v247, 1.0
    %v311 = vadd.f32 %v249, 1.0
    %v312 = vadd.f32 %v251, 1.0
    %v313 = vadd.f32 %v253, 1.0
    %v314 = vadd.f32 %v255, 1.0
    %v315 = vadd.f32 %v257, 1.0
    %v316 = vadd.f32 %v259, 1.0
    %v317 = vadd.f32 %v261, 1.0
    %v318 = vadd.f32 %v263, 1.0
    %v319 = vadd.f32 %v265, 1.0
    %v320 = vadd.f32 %v267, 1.0
    %v321 = vadd.f32 %v269, 1.0
    %v322 = vadd.f32 %v271, 1.0
    %v323 = vadd.f32 %v273, 1.0
    %v324 = vadd.f32 %v275, 1.0
    %v325 = vadd.f32 %v277, 1.0
    %v326 = vadd.f32 %v279, 1.0
    %v327 = vadd.f32 %v281, 1.0
    %v328 = vadd.f32 %v283, 1.0
    %v329 = vadd.f32 %v285, 1.0
    %v330 = vadd.f32 %v287, 1.0
    %v331 = vadd.f32 %v289, 1.0
    %v332 = vadd.f32 %v291, 1.0
    %v333 = vadd.f32 %v293, 1.0
    %v334 = vadd.f32 %v295, 1.0
    %v335 = vadd.f32 %v297, 1.0
    %v336 = vadd.f32 %v299, 1.0
    %v337 = vadd.f32 %v301, 1.0
    %v338 = vadd.f32 %v303, 1.0
    %v339 = vadd.f32 %v305, 1.0
    %v340 = vadd.f32 %v307, 1.0
    %v341 = vadd.f32 %v309, 1.0
    %v342 = vrcp.pop %v310
    %v343 = vmul.f32 %v310, %v342
    %v344 = vsub.f32 1.0, %v343
    %v345 = vmul.f32 %v342, %v344
    %v346 = vadd.f32 %v342, %v345
    %vm347 = vweird.f32 %v310
    %vm348 = vweird.f32 %v342
    %vm349 = vmor %vm347, %vm348
    %v350 = vsel %vm349, %v342, %v346
    %v351 = vand.u32 2147483647, %v310
    %vm352 = vcmp.eq.f32.partialorder %v351, 8.507059e+37
    %v353 = vand.u32 %v310, 2147483648
    %v354 = vor.u32 1.1754944e-38, %v353
    %v355 = vsel %vm352, %v354, %v350
    %v356 = vmul.f32 1.0, %v355
    %v357 = vrcp.pop %v311
    %v358 = vmul.f32 %v311, %v357
    %v359 = vsub.f32 1.0, %v358
    %v360 = vmul.f32 %v357, %v359
    %v361 = vadd.f32 %v357, %v360
    %vm362 = vweird.f32 %v311
    %vm363 = vweird.f32 %v357
    %vm364 = vmor %vm362, %vm363
    %v365 = vsel %vm364, %v357, %v361
    %v366 = vand.u32 2147483647, %v311
    %vm367 = vcmp.eq.f32.partialorder %v366, 8.507059e+37
    %v368 = vand.u32 %v311, 2147483648
    %v369 = vor.u32 1.1754944e-38, %v368
    %v370 = vsel %vm367, %v369, %v365
    %v371 = vmul.f32 1.0, %v370
    %v372 = vrcp.pop %v312
    %v373 = vmul.f32 %v312, %v372
    %v374 = vsub.f32 1.0, %v373
    %v375 = vmul.f32 %v372, %v374
    %v376 = vadd.f32 %v372, %v375
    %vm377 = vweird.f32 %v312
    %vm378 = vweird.f32 %v372
    %vm379 = vmor %vm377, %vm378
    %v380 = vsel %vm379, %v372, %v376
    %v381 = vand.u32 2147483647, %v312
    %vm382 = vcmp.eq.f32.partialorder %v381, 8.507059e+37
    %v383 = vand.u32 %v312, 2147483648
    %v384 = vor.u32 1.1754944e-38, %v383
    %v385 = vsel %vm382, %v384, %v380
    %v386 = vmul.f32 1.0, %v385
    %v387 = vrcp.pop %v313
    %v388 = vmul.f32 %v313, %v387
    %v389 = vsub.f32 1.0, %v388
    %v390 = vmul.f32 %v387, %v389
    %v391 = vadd.f32 %v387, %v390
    %vm392 = vweird.f32 %v313
    %vm393 = vweird.f32 %v387
    %vm394 = vmor %vm392, %vm393
    %v395 = vsel %vm394, %v387, %v391
    %v396 = vand.u32 2147483647, %v313
    %vm397 = vcmp.eq.f32.partialorder %v396, 8.507059e+37
    %v398 = vand.u32 %v313, 2147483648
    %v399 = vor.u32 1.1754944e-38, %v398
    %v400 = vsel %vm397, %v399, %v395
    %v401 = vmul.f32 1.0, %v400
    %v402 = vrcp.pop %v314
    %v403 = vmul.f32 %v314, %v402
    %v404 = vsub.f32 1.0, %v403
    %v405 = vmul.f32 %v402, %v404
    %v406 = vadd.f32 %v402, %v405
    %vm407 = vweird.f32 %v314
    %vm408 = vweird.f32 %v402
    %vm409 = vmor %vm407, %vm408
    %v410 = vsel %vm409, %v402, %v406
    %v411 = vand.u32 2147483647, %v314
    %vm412 = vcmp.eq.f32.partialorder %v411, 8.507059e+37
    %v413 = vand.u32 %v314, 2147483648
    %v414 = vor.u32 1.1754944e-38, %v413
    %v415 = vsel %vm412, %v414, %v410
    %v416 = vmul.f32 1.0, %v415
    %v417 = vrcp.pop %v315
    %v418 = vmul.f32 %v315, %v417
    %v419 = vsub.f32 1.0, %v418
    %v420 = vmul.f32 %v417, %v419
    %v421 = vadd.f32 %v417, %v420
    %vm422 = vweird.f32 %v315
    %vm423 = vweird.f32 %v417
    %vm424 = vmor %vm422, %vm423
    %v425 = vsel %vm424, %v417, %v421
    %v426 = vand.u32 2147483647, %v315
    %vm427 = vcmp.eq.f32.partialorder %v426, 8.507059e+37
    %v428 = vand.u32 %v315, 2147483648
    %v429 = vor.u32 1.1754944e-38, %v428
    %v430 = vsel %vm427, %v429, %v425
    %v431 = vmul.f32 1.0, %v430
    %v432 = vrcp.pop %v316
    %v433 = vmul.f32 %v316, %v432
    %v434 = vsub.f32 1.0, %v433
    %v435 = vmul.f32 %v432, %v434
    %v436 = vadd.f32 %v432, %v435
    %vm437 = vweird.f32 %v316
    %vm438 = vweird.f32 %v432
    %vm439 = vmor %vm437, %vm438
    %v440 = vsel %vm439, %v432, %v436
    %v441 = vand.u32 2147483647, %v316
    %vm442 = vcmp.eq.f32.partialorder %v441, 8.507059e+37
    %v443 = vand.u32 %v316, 2147483648
    %v444 = vor.u32 1.1754944e-38, %v443
    %v445 = vsel %vm442, %v444, %v440
    %v446 = vmul.f32 1.0, %v445
    %v447 = vrcp.pop %v317
    %v448 = vmul.f32 %v317, %v447
    %v449 = vsub.f32 1.0, %v448
    %v450 = vmul.f32 %v447, %v449
    %v451 = vadd.f32 %v447, %v450
    %vm452 = vweird.f32 %v317
    %vm453 = vweird.f32 %v447
    %vm454 = vmor %vm452, %vm453
    %v455 = vsel %vm454, %v447, %v451
    %v456 = vand.u32 2147483647, %v317
    %vm457 = vcmp.eq.f32.partialorder %v456, 8.507059e+37
    %v458 = vand.u32 %v317, 2147483648
    %v459 = vor.u32 1.1754944e-38, %v458
    %v460 = vsel %vm457, %v459, %v455
    %v461 = vmul.f32 1.0, %v460
    %v462 = vrcp.pop %v318
    %v463 = vmul.f32 %v318, %v462
    %v464 = vsub.f32 1.0, %v463
    %v465 = vmul.f32 %v462, %v464
    %v466 = vadd.f32 %v462, %v465
    %vm467 = vweird.f32 %v318
    %vm468 = vweird.f32 %v462
    %vm469 = vmor %vm467, %vm468
    %v470 = vsel %vm469, %v462, %v466
    %v471 = vand.u32 2147483647, %v318
    %vm472 = vcmp.eq.f32.partialorder %v471, 8.507059e+37
    %v473 = vand.u32 %v318, 2147483648
    %v474 = vor.u32 1.1754944e-38, %v473
    %v475 = vsel %vm472, %v474, %v470
    %v476 = vmul.f32 1.0, %v475
    %v477 = vrcp.pop %v319
    %v478 = vmul.f32 %v319, %v477
    %v479 = vsub.f32 1.0, %v478
    %v480 = vmul.f32 %v477, %v479
    %v481 = vadd.f32 %v477, %v480
    %vm482 = vweird.f32 %v319
    %vm483 = vweird.f32 %v477
    %vm484 = vmor %vm482, %vm483
    %v485 = vsel %vm484, %v477, %v481
    %v486 = vand.u32 2147483647, %v319
    %vm487 = vcmp.eq.f32.partialorder %v486, 8.507059e+37
    %v488 = vand.u32 %v319, 2147483648
    %v489 = vor.u32 1.1754944e-38, %v488
    %v490 = vsel %vm487, %v489, %v485
    %v491 = vmul.f32 1.0, %v490
    %v492 = vrcp.pop %v320
    %v493 = vmul.f32 %v320, %v492
    %v494 = vsub.f32 1.0, %v493
    %v495 = vmul.f32 %v492, %v494
    %v496 = vadd.f32 %v492, %v495
    %vm497 = vweird.f32 %v320
    %vm498 = vweird.f32 %v492
    %vm499 = vmor %vm497, %vm498
    %v500 = vsel %vm499, %v492, %v496
    %v501 = vand.u32 2147483647, %v320
    %vm502 = vcmp.eq.f32.partialorder %v501, 8.507059e+37
    %v503 = vand.u32 %v320, 2147483648
    %v504 = vor.u32 1.1754944e-38, %v503
    %v505 = vsel %vm502, %v504, %v500
    %v506 = vmul.f32 1.0, %v505
    %v507 = vrcp.pop %v321
    %v508 = vmul.f32 %v321, %v507
    %v509 = vsub.f32 1.0, %v508
    %v510 = vmul.f32 %v507, %v509
    %v511 = vadd.f32 %v507, %v510
    %vm512 = vweird.f32 %v321
    %vm513 = vweird.f32 %v507
    %vm514 = vmor %vm512, %vm513
    %v515 = vsel %vm514, %v507, %v511
    %v516 = vand.u32 2147483647, %v321
    %vm517 = vcmp.eq.f32.partialorder %v516, 8.507059e+37
    %v518 = vand.u32 %v321, 2147483648
    %v519 = vor.u32 1.1754944e-38, %v518
    %v520 = vsel %vm517, %v519, %v515
    %v521 = vmul.f32 1.0, %v520
    %v522 = vrcp.pop %v322
    %v523 = vmul.f32 %v322, %v522
    %v524 = vsub.f32 1.0, %v523
    %v525 = vmul.f32 %v522, %v524
    %v526 = vadd.f32 %v522, %v525
    %vm527 = vweird.f32 %v322
    %vm528 = vweird.f32 %v522
    %vm529 = vmor %vm527, %vm528
    %v530 = vsel %vm529, %v522, %v526
    %v531 = vand.u32 2147483647, %v322
    %vm532 = vcmp.eq.f32.partialorder %v531, 8.507059e+37
    %v533 = vand.u32 %v322, 2147483648
    %v534 = vor.u32 1.1754944e-38, %v533
    %v535 = vsel %vm532, %v534, %v530
    %v536 = vmul.f32 1.0, %v535
    %v537 = vrcp.pop %v323
    %v538 = vmul.f32 %v323, %v537
    %v539 = vsub.f32 1.0, %v538
    %v540 = vmul.f32 %v537, %v539
    %v541 = vadd.f32 %v537, %v540
    %vm542 = vweird.f32 %v323
    %vm543 = vweird.f32 %v537
    %vm544 = vmor %vm542, %vm543
    %v545 = vsel %vm544, %v537, %v541
    %v546 = vand.u32 2147483647, %v323
    %vm547 = vcmp.eq.f32.partialorder %v546, 8.507059e+37
    %v548 = vand.u32 %v323, 2147483648
    %v549 = vor.u32 1.1754944e-38, %v548
    %v550 = vsel %vm547, %v549, %v545
    %v551 = vmul.f32 1.0, %v550
    %v552 = vrcp.pop %v324
    %v553 = vmul.f32 %v324, %v552
    %v554 = vsub.f32 1.0, %v553
    %v555 = vmul.f32 %v552, %v554
    %v556 = vadd.f32 %v552, %v555
    %vm557 = vweird.f32 %v324
    %vm558 = vweird.f32 %v552
    %vm559 = vmor %vm557, %vm558
    %v560 = vsel %vm559, %v552, %v556
    %v561 = vand.u32 2147483647, %v324
    %vm562 = vcmp.eq.f32.partialorder %v561, 8.507059e+37
    %v563 = vand.u32 %v324, 2147483648
    %v564 = vor.u32 1.1754944e-38, %v563
    %v565 = vsel %vm562, %v564, %v560
    %v566 = vmul.f32 1.0, %v565
    %v567 = vrcp.pop %v325
    %v568 = vmul.f32 %v325, %v567
    %v569 = vsub.f32 1.0, %v568
    %v570 = vmul.f32 %v567, %v569
    %v571 = vadd.f32 %v567, %v570
    %vm572 = vweird.f32 %v325
    %vm573 = vweird.f32 %v567
    %vm574 = vmor %vm572, %vm573
    %v575 = vsel %vm574, %v567, %v571
    %v576 = vand.u32 2147483647, %v325
    %vm577 = vcmp.eq.f32.partialorder %v576, 8.507059e+37
    %v578 = vand.u32 %v325, 2147483648
    %v579 = vor.u32 1.1754944e-38, %v578
    %v580 = vsel %vm577, %v579, %v575
    %v581 = vmul.f32 1.0, %v580
    %v582 = vrcp.pop %v326
    %v583 = vmul.f32 %v326, %v582
    %v584 = vsub.f32 1.0, %v583
    %v585 = vmul.f32 %v582, %v584
    %v586 = vadd.f32 %v582, %v585
    %vm587 = vweird.f32 %v326
    %vm588 = vweird.f32 %v582
    %vm589 = vmor %vm587, %vm588
    %v590 = vsel %vm589, %v582, %v586
    %v591 = vand.u32 2147483647, %v326
    %vm592 = vcmp.eq.f32.partialorder %v591, 8.507059e+37
    %v593 = vand.u32 %v326, 2147483648
    %v594 = vor.u32 1.1754944e-38, %v593
    %v595 = vsel %vm592, %v594, %v590
    %v596 = vmul.f32 1.0, %v595
    %v597 = vrcp.pop %v327
    %v598 = vmul.f32 %v327, %v597
    %v599 = vsub.f32 1.0, %v598
    %v600 = vmul.f32 %v597, %v599
    %v601 = vadd.f32 %v597, %v600
    %vm602 = vweird.f32 %v327
    %vm603 = vweird.f32 %v597
    %vm604 = vmor %vm602, %vm603
    %v605 = vsel %vm604, %v597, %v601
    %v606 = vand.u32 2147483647, %v327
    %vm607 = vcmp.eq.f32.partialorder %v606, 8.507059e+37
    %v608 = vand.u32 %v327, 2147483648
    %v609 = vor.u32 1.1754944e-38, %v608
    %v610 = vsel %vm607, %v609, %v605
    %v611 = vmul.f32 1.0, %v610
    %v612 = vrcp.pop %v328
    %v613 = vmul.f32 %v328, %v612
    %v614 = vsub.f32 1.0, %v613
    %v615 = vmul.f32 %v612, %v614
    %v616 = vadd.f32 %v612, %v615
    %vm617 = vweird.f32 %v328
    %vm618 = vweird.f32 %v612
    %vm619 = vmor %vm617, %vm618
    %v620 = vsel %vm619, %v612, %v616
    %v621 = vand.u32 2147483647, %v328
    %vm622 = vcmp.eq.f32.partialorder %v621, 8.507059e+37
    %v623 = vand.u32 %v328, 2147483648
    %v624 = vor.u32 1.1754944e-38, %v623
    %v625 = vsel %vm622, %v624, %v620
    %v626 = vmul.f32 1.0, %v625
    %v627 = vrcp.pop %v329
    %v628 = vmul.f32 %v329, %v627
    %v629 = vsub.f32 1.0, %v628
    %v630 = vmul.f32 %v627, %v629
    %v631 = vadd.f32 %v627, %v630
    %vm632 = vweird.f32 %v329
    %vm633 = vweird.f32 %v627
    %vm634 = vmor %vm632, %vm633
    %v635 = vsel %vm634, %v627, %v631
    %v636 = vand.u32 2147483647, %v329
    %vm637 = vcmp.eq.f32.partialorder %v636, 8.507059e+37
    %v638 = vand.u32 %v329, 2147483648
    %v639 = vor.u32 1.1754944e-38, %v638
    %v640 = vsel %vm637, %v639, %v635
    %v641 = vmul.f32 1.0, %v640
    %v642 = vrcp.pop %v330
    %v643 = vmul.f32 %v330, %v642
    %v644 = vsub.f32 1.0, %v643
    %v645 = vmul.f32 %v642, %v644
    %v646 = vadd.f32 %v642, %v645
    %vm647 = vweird.f32 %v330
    %vm648 = vweird.f32 %v642
    %vm649 = vmor %vm647, %vm648
    %v650 = vsel %vm649, %v642, %v646
    %v651 = vand.u32 2147483647, %v330
    %vm652 = vcmp.eq.f32.partialorder %v651, 8.507059e+37
    %v653 = vand.u32 %v330, 2147483648
    %v654 = vor.u32 1.1754944e-38, %v653
    %v655 = vsel %vm652, %v654, %v650
    %v656 = vmul.f32 1.0, %v655
    %v657 = vrcp.pop %v331
    %v658 = vmul.f32 %v331, %v657
    %v659 = vsub.f32 1.0, %v658
    %v660 = vmul.f32 %v657, %v659
    %v661 = vadd.f32 %v657, %v660
    %vm662 = vweird.f32 %v331
    %vm663 = vweird.f32 %v657
    %vm664 = vmor %vm662, %vm663
    %v665 = vsel %vm664, %v657, %v661
    %v666 = vand.u32 2147483647, %v331
    %vm667 = vcmp.eq.f32.partialorder %v666, 8.507059e+37
    %v668 = vand.u32 %v331, 2147483648
    %v669 = vor.u32 1.1754944e-38, %v668
    %v670 = vsel %vm667, %v669, %v665
    %v671 = vmul.f32 1.0, %v670
    %v672 = vrcp.pop %v332
    %v673 = vmul.f32 %v332, %v672
    %v674 = vsub.f32 1.0, %v673
    %v675 = vmul.f32 %v672, %v674
    %v676 = vadd.f32 %v672, %v675
    %vm677 = vweird.f32 %v332
    %vm678 = vweird.f32 %v672
    %vm679 = vmor %vm677, %vm678
    %v680 = vsel %vm679, %v672, %v676
    %v681 = vand.u32 2147483647, %v332
    %vm682 = vcmp.eq.f32.partialorder %v681, 8.507059e+37
    %v683 = vand.u32 %v332, 2147483648
    %v684 = vor.u32 1.1754944e-38, %v683
    %v685 = vsel %vm682, %v684, %v680
    %v686 = vmul.f32 1.0, %v685
    %v687 = vrcp.pop %v333
    %v688 = vmul.f32 %v333, %v687
    %v689 = vsub.f32 1.0, %v688
    %v690 = vmul.f32 %v687, %v689
    %v691 = vadd.f32 %v687, %v690
    %vm692 = vweird.f32 %v333
    %vm693 = vweird.f32 %v687
    %vm694 = vmor %vm692, %vm693
    %v695 = vsel %vm694, %v687, %v691
    %v696 = vand.u32 2147483647, %v333
    %vm697 = vcmp.eq.f32.partialorder %v696, 8.507059e+37
    %v698 = vand.u32 %v333, 2147483648
    %v699 = vor.u32 1.1754944e-38, %v698
    %v700 = vsel %vm697, %v699, %v695
    %v701 = vmul.f32 1.0, %v700
    %v702 = vrcp.pop %v334
    %v703 = vmul.f32 %v334, %v702
    %v704 = vsub.f32 1.0, %v703
    %v705 = vmul.f32 %v702, %v704
    %v706 = vadd.f32 %v702, %v705
    %vm707 = vweird.f32 %v334
    %vm708 = vweird.f32 %v702
    %vm709 = vmor %vm707, %vm708
    %v710 = vsel %vm709, %v702, %v706
    %v711 = vand.u32 2147483647, %v334
    %vm712 = vcmp.eq.f32.partialorder %v711, 8.507059e+37
    %v713 = vand.u32 %v334, 2147483648
    %v714 = vor.u32 1.1754944e-38, %v713
    %v715 = vsel %vm712, %v714, %v710
    %v716 = vmul.f32 1.0, %v715
    %v717 = vrcp.pop %v335
    %v718 = vmul.f32 %v335, %v717
    %v719 = vsub.f32 1.0, %v718
    %v720 = vmul.f32 %v717, %v719
    %v721 = vadd.f32 %v717, %v720
    %vm722 = vweird.f32 %v335
    %vm723 = vweird.f32 %v717
    %vm724 = vmor %vm722, %vm723
    %v725 = vsel %vm724, %v717, %v721
    %v726 = vand.u32 2147483647, %v335
    %vm727 = vcmp.eq.f32.partialorder %v726, 8.507059e+37
    %v728 = vand.u32 %v335, 2147483648
    %v729 = vor.u32 1.1754944e-38, %v728
    %v730 = vsel %vm727, %v729, %v725
    %v731 = vmul.f32 1.0, %v730
    %v732 = vrcp.pop %v336
    %v733 = vmul.f32 %v336, %v732
    %v734 = vsub.f32 1.0, %v733
    %v735 = vmul.f32 %v732, %v734
    %v736 = vadd.f32 %v732, %v735
    %vm737 = vweird.f32 %v336
    %vm738 = vweird.f32 %v732
    %vm739 = vmor %vm737, %vm738
    %v740 = vsel %vm739, %v732, %v736
    %v741 = vand.u32 2147483647, %v336
    %vm742 = vcmp.eq.f32.partialorder %v741, 8.507059e+37
    %v743 = vand.u32 %v336, 2147483648
    %v744 = vor.u32 1.1754944e-38, %v743
    %v745 = vsel %vm742, %v744, %v740
    %v746 = vmul.f32 1.0, %v745
    %v747 = vrcp.pop %v337
    %v748 = vmul.f32 %v337, %v747
    %v749 = vsub.f32 1.0, %v748
    %v750 = vmul.f32 %v747, %v749
    %v751 = vadd.f32 %v747, %v750
    %vm752 = vweird.f32 %v337
    %vm753 = vweird.f32 %v747
    %vm754 = vmor %vm752, %vm753
    %v755 = vsel %vm754, %v747, %v751
    %v756 = vand.u32 2147483647, %v337
    %vm757 = vcmp.eq.f32.partialorder %v756, 8.507059e+37
    %v758 = vand.u32 %v337, 2147483648
    %v759 = vor.u32 1.1754944e-38, %v758
    %v760 = vsel %vm757, %v759, %v755
    %v761 = vmul.f32 1.0, %v760
    %v762 = vrcp.pop %v338
    %v763 = vmul.f32 %v338, %v762
    %v764 = vsub.f32 1.0, %v763
    %v765 = vmul.f32 %v762, %v764
    %v766 = vadd.f32 %v762, %v765
    %vm767 = vweird.f32 %v338
    %vm768 = vweird.f32 %v762
    %vm769 = vmor %vm767, %vm768
    %v770 = vsel %vm769, %v762, %v766
    %v771 = vand.u32 2147483647, %v338
    %vm772 = vcmp.eq.f32.partialorder %v771, 8.507059e+37
    %v773 = vand.u32 %v338, 2147483648
    %v774 = vor.u32 1.1754944e-38, %v773
    %v775 = vsel %vm772, %v774, %v770
    %v776 = vmul.f32 1.0, %v775
    %v777 = vrcp.pop %v339
    %v778 = vmul.f32 %v339, %v777
    %v779 = vsub.f32 1.0, %v778
    %v780 = vmul.f32 %v777, %v779
    %v781 = vadd.f32 %v777, %v780
    %vm782 = vweird.f32 %v339
    %vm783 = vweird.f32 %v777
    %vm784 = vmor %vm782, %vm783
    %v785 = vsel %vm784, %v777, %v781
    %v786 = vand.u32 2147483647, %v339
    %vm787 = vcmp.eq.f32.partialorder %v786, 8.507059e+37
    %v788 = vand.u32 %v339, 2147483648
    %v789 = vor.u32 1.1754944e-38, %v788
    %v790 = vsel %vm787, %v789, %v785
    %v791 = vmul.f32 1.0, %v790
    %v792 = vrcp.pop %v340
    %v793 = vmul.f32 %v340, %v792
    %v794 = vsub.f32 1.0, %v793
    %v795 = vmul.f32 %v792, %v794
    %v796 = vadd.f32 %v792, %v795
    %vm797 = vweird.f32 %v340
    %vm798 = vweird.f32 %v792
    %vm799 = vmor %vm797, %vm798
    %v800 = vsel %vm799, %v792, %v796
    %v801 = vand.u32 2147483647, %v340
    %vm802 = vcmp.eq.f32.partialorder %v801, 8.507059e+37
    %v803 = vand.u32 %v340, 2147483648
    %v804 = vor.u32 1.1754944e-38, %v803
    %v805 = vsel %vm802, %v804, %v800
    %v806 = vmul.f32 1.0, %v805
    %v807 = vrcp.pop %v341
    %v808 = vmul.f32 %v341, %v807
    %v809 = vsub.f32 1.0, %v808
    %v810 = vmul.f32 %v807, %v809
    %v811 = vadd.f32 %v807, %v810
    %vm812 = vweird.f32 %v341
    %vm813 = vweird.f32 %v807
    %vm814 = vmor %vm812, %vm813
    %v815 = vsel %vm814, %v807, %v811
    %v816 = vand.u32 2147483647, %v341
    %vm817 = vcmp.eq.f32.partialorder %v816, 8.507059e+37
    %v818 = vand.u32 %v341, 2147483648
    %v819 = vor.u32 1.1754944e-38, %v818
    %v820 = vsel %vm817, %v819, %v815
    %v821 = vmul.f32 1.0, %v820
    %v822 = vmul.f32 %v150, %v356
    %v823 = vmul.f32 %v151, %v371
    %v824 = vmul.f32 %v152, %v386
    %v825 = vmul.f32 %v153, %v401
    %v826 = vmul.f32 %v154, %v416
    %v827 = vmul.f32 %v155, %v431
    %v828 = vmul.f32 %v156, %v446
    %v829 = vmul.f32 %v157, %v461
    %v830 = vmul.f32 %v158, %v476
    %v831 = vmul.f32 %v159, %v491
    %v832 = vmul.f32 %v160, %v506
    %v833 = vmul.f32 %v161, %v521
    %v834 = vmul.f32 %v162, %v536
    %v835 = vmul.f32 %v163, %v551
    %v836 = vmul.f32 %v164, %v566
    %v837 = vmul.f32 %v165, %v581
    %v838 = vmul.f32 %v166, %v596
    %v839 = vmul.f32 %v167, %v611
    %v840 = vmul.f32 %v168, %v626
    %v841 = vmul.f32 %v169, %v641
    %v842 = vmul.f32 %v170, %v656
    %v843 = vmul.f32 %v171, %v671
    %v844 = vmul.f32 %v172, %v686
    %v845 = vmul.f32 %v173, %v701
    %v846 = vmul.f32 %v174, %v716
    %v847 = vmul.f32 %v175, %v731
    %v848 = vmul.f32 %v176, %v746
    %v849 = vmul.f32 %v177, %v761
    %v850 = vmul.f32 %v178, %v776
    %v851 = vmul.f32 %v179, %v791
    %v852 = vmul.f32 %v180, %v806
    %v853 = vmul.f32 %v181, %v821
    %v854 = vld [vmem:[#allocation7] sm:$0xff]
    %v855 = vld [vmem:[#allocation7 + $0x8] sm:$0xff]
    %v856 = vld [vmem:[#allocation7 + $0x10] sm:$0xff]
    %v857 = vld [vmem:[#allocation7 + $0x18] sm:$0xff]
    %v858 = vld [vmem:[#allocation7 + $0x20] sm:$0xff]
    %v859 = vld [vmem:[#allocation7 + $0x28] sm:$0xff]
    %v860 = vld [vmem:[#allocation7 + $0x30] sm:$0xff]
    %v861 = vld [vmem:[#allocation7 + $0x38] sm:$0xff]
    %v862 = vld [vmem:[#allocation7 + $0x40] sm:$0xff]
    %v863 = vld [vmem:[#allocation7 + $0x48] sm:$0xff]
    %v864 = vld [vmem:[#allocation7 + $0x50] sm:$0xff]
    %v865 = vld [vmem:[#allocation7 + $0x58] sm:$0xff]
    %v866 = vld [vmem:[#allocation7 + $0x60] sm:$0xff]
    %v867 = vld [vmem:[#allocation7 + $0x68] sm:$0xff]
    %v868 = vld [vmem:[#allocation7 + $0x70] sm:$0xff]
    %v869 = vld [vmem:[#allocation7 + $0x78] sm:$0xff]
    %v870 = vtanh.pop %v854
    %v871 = vtanh.pop %v855
    %v872 = vtanh.pop %v856
    %v873 = vtanh.pop %v857
    %v874 = vtanh.pop %v858
    %v875 = vtanh.pop %v859
    %v876 = vtanh.pop %v860
    %v877 = vtanh.pop %v861
    %v878 = vtanh.pop %v862
    %v879 = vtanh.pop %v863
    %v880 = vtanh.pop %v864
    %v881 = vtanh.pop %v865
    %v882 = vtanh.pop %v866
    %v883 = vtanh.pop %v867
    %v884 = vtanh.pop %v868
    %v885 = vtanh.pop %v869
    %v886 = vld [vmem:[#allocation8] sm:$0xff]
    %v887 = vld [vmem:[#allocation8 + $0x8] sm:$0xff]
    %v888 = vld [vmem:[#allocation8 + $0x10] sm:$0xff]
    %v889 = vld [vmem:[#allocation8 + $0x18] sm:$0xff]
    %v890 = vld [vmem:[#allocation8 + $0x20] sm:$0xff]
    %v891 = vld [vmem:[#allocation8 + $0x28] sm:$0xff]
    %v892 = vld [vmem:[#allocation8 + $0x30] sm:$0xff]
    %v893 = vld [vmem:[#allocation8 + $0x38] sm:$0xff]
    %v894 = vld [vmem:[#allocation8 + $0x40] sm:$0xff]
    %v895 = vld [vmem:[#allocation8 + $0x48] sm:$0xff]
    %v896 = vld [vmem:[#allocation8 + $0x50] sm:$0xff]
    %v897 = vld [vmem:[#allocation8 + $0x58] sm:$0xff]
    %v898 = vld [vmem:[#allocation8 + $0x60] sm:$0xff]
    %v899 = vld [vmem:[#allocation8 + $0x68] sm:$0xff]
    %v900 = vld [vmem:[#allocation8 + $0x70] sm:$0xff]
    %v901 = vld [vmem:[#allocation8 + $0x78] sm:$0xff]
    %v902 = vxor.u32 %v886, 2147483648
    %v903 = vxor.u32 %v887, 2147483648
    %v904 = vxor.u32 %v888, 2147483648
    %v905 = vxor.u32 %v889, 2147483648
    %v906 = vxor.u32 %v890, 2147483648
    %v907 = vxor.u32 %v891, 2147483648
    %v908 = vxor.u32 %v892, 2147483648
    %v909 = vxor.u32 %v893, 2147483648
    %v910 = vxor.u32 %v894, 2147483648
    %v911 = vxor.u32 %v895, 2147483648
    %v912 = vxor.u32 %v896, 2147483648
    %v913 = vxor.u32 %v897, 2147483648
    %v914 = vxor.u32 %v898, 2147483648
    %v915 = vxor.u32 %v899, 2147483648
    %v916 = vxor.u32 %v900, 2147483648
    %v917 = vxor.u32 %v901, 2147483648
    %v918 = vmul.f32 %v902, 1.442695
    %v919 = vpow.pop %v918
    %v920 = vmul.f32 %v903, 1.442695
    %v921 = vpow.pop %v920
    %v922 = vmul.f32 %v904, 1.442695
    %v923 = vpow.pop %v922
    %v924 = vmul.f32 %v905, 1.442695
    %v925 = vpow.pop %v924
    %v926 = vmul.f32 %v906, 1.442695
    %v927 = vpow.pop %v926
    %v928 = vmul.f32 %v907, 1.442695
    %v929 = vpow.pop %v928
    %v930 = vmul.f32 %v908, 1.442695
    %v931 = vpow.pop %v930
    %v932 = vmul.f32 %v909, 1.442695
    %v933 = vpow.pop %v932
    %v934 = vmul.f32 %v910, 1.442695
    %v935 = vpow.pop %v934
    %v936 = vmul.f32 %v911, 1.442695
    %v937 = vpow.pop %v936
    %v938 = vmul.f32 %v912, 1.442695
    %v939 = vpow.pop %v938
    %v940 = vmul.f32 %v913, 1.442695
    %v941 = vpow.pop %v940
    %v942 = vmul.f32 %v914, 1.442695
    %v943 = vpow.pop %v942
    %v944 = vmul.f32 %v915, 1.442695
    %v945 = vpow.pop %v944
    %v946 = vmul.f32 %v916, 1.442695
    %v947 = vpow.pop %v946
    %v948 = vmul.f32 %v917, 1.442695
    %v949 = vpow.pop %v948
    %v950 = vadd.f32 %v919, 1.0
    %v951 = vadd.f32 %v921, 1.0
    %v952 = vadd.f32 %v923, 1.0
    %v953 = vadd.f32 %v925, 1.0
    %v954 = vadd.f32 %v927, 1.0
    %v955 = vadd.f32 %v929, 1.0
    %v956 = vadd.f32 %v931, 1.0
    %v957 = vadd.f32 %v933, 1.0
    %v958 = vadd.f32 %v935, 1.0
    %v959 = vadd.f32 %v937, 1.0
    %v960 = vadd.f32 %v939, 1.0
    %v961 = vadd.f32 %v941, 1.0
    %v962 = vadd.f32 %v943, 1.0
    %v963 = vadd.f32 %v945, 1.0
    %v964 = vadd.f32 %v947, 1.0
    %v965 = vadd.f32 %v949, 1.0
    %v966 = vrcp.pop %v950
    %v967 = vmul.f32 %v950, %v966
    %v968 = vsub.f32 1.0, %v967
    %v969 = vmul.f32 %v966, %v968
    %v970 = vadd.f32 %v966, %v969
    %vm971 = vweird.f32 %v950
    %vm972 = vweird.f32 %v966
    %vm973 = vmor %vm971, %vm972
    %v974 = vsel %vm973, %v966, %v970
    %v975 = vand.u32 2147483647, %v950
    %vm976 = vcmp.eq.f32.partialorder %v975, 8.507059e+37
    %v977 = vand.u32 %v950, 2147483648
    %v978 = vor.u32 1.1754944e-38, %v977
    %v979 = vsel %vm976, %v978, %v974
    %v980 = vmul.f32 1.0, %v979
    %v981 = vrcp.pop %v951
    %v982 = vmul.f32 %v951, %v981
    %v983 = vsub.f32 1.0, %v982
    %v984 = vmul.f32 %v981, %v983
    %v985 = vadd.f32 %v981, %v984
    %vm986 = vweird.f32 %v951
    %vm987 = vweird.f32 %v981
    %vm988 = vmor %vm986, %vm987
    %v989 = vsel %vm988, %v981, %v985
    %v990 = vand.u32 2147483647, %v951
    %vm991 = vcmp.eq.f32.partialorder %v990, 8.507059e+37
    %v992 = vand.u32 %v951, 2147483648
    %v993 = vor.u32 1.1754944e-38, %v992
    %v994 = vsel %vm991, %v993, %v989
    %v995 = vmul.f32 1.0, %v994
    %v996 = vrcp.pop %v952
    %v997 = vmul.f32 %v952, %v996
    %v998 = vsub.f32 1.0, %v997
    %v999 = vmul.f32 %v996, %v998
    %v1000 = vadd.f32 %v996, %v999
    %vm1001 = vweird.f32 %v952
    %vm1002 = vweird.f32 %v996
    %vm1003 = vmor %vm1001, %vm1002
    %v1004 = vsel %vm1003, %v996, %v1000
    %v1005 = vand.u32 2147483647, %v952
    %vm1006 = vcmp.eq.f32.partialorder %v1005, 8.507059e+37
    %v1007 = vand.u32 %v952, 2147483648
    %v1008 = vor.u32 1.1754944e-38, %v1007
    %v1009 = vsel %vm1006, %v1008, %v1004
    %v1010 = vmul.f32 1.0, %v1009
    %v1011 = vrcp.pop %v953
    %v1012 = vmul.f32 %v953, %v1011
    %v1013 = vsub.f32 1.0, %v1012
    %v1014 = vmul.f32 %v1011, %v1013
    %v1015 = vadd.f32 %v1011, %v1014
    %vm1016 = vweird.f32 %v953
    %vm1017 = vweird.f32 %v1011
    %vm1018 = vmor %vm1016, %vm1017
    %v1019 = vsel %vm1018, %v1011, %v1015
    %v1020 = vand.u32 2147483647, %v953
    %vm1021 = vcmp.eq.f32.partialorder %v1020, 8.507059e+37
    %v1022 = vand.u32 %v953, 2147483648
    %v1023 = vor.u32 1.1754944e-38, %v1022
    %v1024 = vsel %vm1021, %v1023, %v1019
    %v1025 = vmul.f32 1.0, %v1024
    %v1026 = vrcp.pop %v954
    %v1027 = vmul.f32 %v954, %v1026
    %v1028 = vsub.f32 1.0, %v1027
    %v1029 = vmul.f32 %v1026, %v1028
    %v1030 = vadd.f32 %v1026, %v1029
    %vm1031 = vweird.f32 %v954
    %vm1032 = vweird.f32 %v1026
    %vm1033 = vmor %vm1031, %vm1032
    %v1034 = vsel %vm1033, %v1026, %v1030
    %v1035 = vand.u32 2147483647, %v954
    %vm1036 = vcmp.eq.f32.partialorder %v1035, 8.507059e+37
    %v1037 = vand.u32 %v954, 2147483648
    %v1038 = vor.u32 1.1754944e-38, %v1037
    %v1039 = vsel %vm1036, %v1038, %v1034
    %v1040 = vmul.f32 1.0, %v1039
    %v1041 = vrcp.pop %v955
    %v1042 = vmul.f32 %v955, %v1041
    %v1043 = vsub.f32 1.0, %v1042
    %v1044 = vmul.f32 %v1041, %v1043
    %v1045 = vadd.f32 %v1041, %v1044
    %vm1046 = vweird.f32 %v955
    %vm1047 = vweird.f32 %v1041
    %vm1048 = vmor %vm1046, %vm1047
    %v1049 = vsel %vm1048, %v1041, %v1045
    %v1050 = vand.u32 2147483647, %v955
    %vm1051 = vcmp.eq.f32.partialorder %v1050, 8.507059e+37
    %v1052 = vand.u32 %v955, 2147483648
    %v1053 = vor.u32 1.1754944e-38, %v1052
    %v1054 = vsel %vm1051, %v1053, %v1049
    %v1055 = vmul.f32 1.0, %v1054
    %v1056 = vrcp.pop %v956
    %v1057 = vmul.f32 %v956, %v1056
    %v1058 = vsub.f32 1.0, %v1057
    %v1059 = vmul.f32 %v1056, %v1058
    %v1060 = vadd.f32 %v1056, %v1059
    %vm1061 = vweird.f32 %v956
    %vm1062 = vweird.f32 %v1056
    %vm1063 = vmor %vm1061, %vm1062
    %v1064 = vsel %vm1063, %v1056, %v1060
    %v1065 = vand.u32 2147483647, %v956
    %vm1066 = vcmp.eq.f32.partialorder %v1065, 8.507059e+37
    %v1067 = vand.u32 %v956, 2147483648
    %v1068 = vor.u32 1.1754944e-38, %v1067
    %v1069 = vsel %vm1066, %v1068, %v1064
    %v1070 = vmul.f32 1.0, %v1069
    %v1071 = vrcp.pop %v957
    %v1072 = vmul.f32 %v957, %v1071
    %v1073 = vsub.f32 1.0, %v1072
    %v1074 = vmul.f32 %v1071, %v1073
    %v1075 = vadd.f32 %v1071, %v1074
    %vm1076 = vweird.f32 %v957
    %vm1077 = vweird.f32 %v1071
    %vm1078 = vmor %vm1076, %vm1077
    %v1079 = vsel %vm1078, %v1071, %v1075
    %v1080 = vand.u32 2147483647, %v957
    %vm1081 = vcmp.eq.f32.partialorder %v1080, 8.507059e+37
    %v1082 = vand.u32 %v957, 2147483648
    %v1083 = vor.u32 1.1754944e-38, %v1082
    %v1084 = vsel %vm1081, %v1083, %v1079
    %v1085 = vmul.f32 1.0, %v1084
    %v1086 = vrcp.pop %v958
    %v1087 = vmul.f32 %v958, %v1086
    %v1088 = vsub.f32 1.0, %v1087
    %v1089 = vmul.f32 %v1086, %v1088
    %v1090 = vadd.f32 %v1086, %v1089
    %vm1091 = vweird.f32 %v958
    %vm1092 = vweird.f32 %v1086
    %vm1093 = vmor %vm1091, %vm1092
    %v1094 = vsel %vm1093, %v1086, %v1090
    %v1095 = vand.u32 2147483647, %v958
    %vm1096 = vcmp.eq.f32.partialorder %v1095, 8.507059e+37
    %v1097 = vand.u32 %v958, 2147483648
    %v1098 = vor.u32 1.1754944e-38, %v1097
    %v1099 = vsel %vm1096, %v1098, %v1094
    %v1100 = vmul.f32 1.0, %v1099
    %v1101 = vrcp.pop %v959
    %v1102 = vmul.f32 %v959, %v1101
    %v1103 = vsub.f32 1.0, %v1102
    %v1104 = vmul.f32 %v1101, %v1103
    %v1105 = vadd.f32 %v1101, %v1104
    %vm1106 = vweird.f32 %v959
    %vm1107 = vweird.f32 %v1101
    %vm1108 = vmor %vm1106, %vm1107
    %v1109 = vsel %vm1108, %v1101, %v1105
    %v1110 = vand.u32 2147483647, %v959
    %vm1111 = vcmp.eq.f32.partialorder %v1110, 8.507059e+37
    %v1112 = vand.u32 %v959, 2147483648
    %v1113 = vor.u32 1.1754944e-38, %v1112
    %v1114 = vsel %vm1111, %v1113, %v1109
    %v1115 = vmul.f32 1.0, %v1114
    %v1116 = vrcp.pop %v960
    %v1117 = vmul.f32 %v960, %v1116
    %v1118 = vsub.f32 1.0, %v1117
    %v1119 = vmul.f32 %v1116, %v1118
    %v1120 = vadd.f32 %v1116, %v1119
    %vm1121 = vweird.f32 %v960
    %vm1122 = vweird.f32 %v1116
    %vm1123 = vmor %vm1121, %vm1122
    %v1124 = vsel %vm1123, %v1116, %v1120
    %v1125 = vand.u32 2147483647, %v960
    %vm1126 = vcmp.eq.f32.partialorder %v1125, 8.507059e+37
    %v1127 = vand.u32 %v960, 2147483648
    %v1128 = vor.u32 1.1754944e-38, %v1127
    %v1129 = vsel %vm1126, %v1128, %v1124
    %v1130 = vmul.f32 1.0, %v1129
    %v1131 = vrcp.pop %v961
    %v1132 = vmul.f32 %v961, %v1131
    %v1133 = vsub.f32 1.0, %v1132
    %v1134 = vmul.f32 %v1131, %v1133
    %v1135 = vadd.f32 %v1131, %v1134
    %vm1136 = vweird.f32 %v961
    %vm1137 = vweird.f32 %v1131
    %vm1138 = vmor %vm1136, %vm1137
    %v1139 = vsel %vm1138, %v1131, %v1135
    %v1140 = vand.u32 2147483647, %v961
    %vm1141 = vcmp.eq.f32.partialorder %v1140, 8.507059e+37
    %v1142 = vand.u32 %v961, 2147483648
    %v1143 = vor.u32 1.1754944e-38, %v1142
    %v1144 = vsel %vm1141, %v1143, %v1139
    %v1145 = vmul.f32 1.0, %v1144
    %v1146 = vrcp.pop %v962
    %v1147 = vmul.f32 %v962, %v1146
    %v1148 = vsub.f32 1.0, %v1147
    %v1149 = vmul.f32 %v1146, %v1148
    %v1150 = vadd.f32 %v1146, %v1149
    %vm1151 = vweird.f32 %v962
    %vm1152 = vweird.f32 %v1146
    %vm1153 = vmor %vm1151, %vm1152
    %v1154 = vsel %vm1153, %v1146, %v1150
    %v1155 = vand.u32 2147483647, %v962
    %vm1156 = vcmp.eq.f32.partialorder %v1155, 8.507059e+37
    %v1157 = vand.u32 %v962, 2147483648
    %v1158 = vor.u32 1.1754944e-38, %v1157
    %v1159 = vsel %vm1156, %v1158, %v1154
    %v1160 = vmul.f32 1.0, %v1159
    %v1161 = vrcp.pop %v963
    %v1162 = vmul.f32 %v963, %v1161
    %v1163 = vsub.f32 1.0, %v1162
    %v1164 = vmul.f32 %v1161, %v1163
    %v1165 = vadd.f32 %v1161, %v1164
    %vm1166 = vweird.f32 %v963
    %vm1167 = vweird.f32 %v1161
    %vm1168 = vmor %vm1166, %vm1167
    %v1169 = vsel %vm1168, %v1161, %v1165
    %v1170 = vand.u32 2147483647, %v963
    %vm1171 = vcmp.eq.f32.partialorder %v1170, 8.507059e+37
    %v1172 = vand.u32 %v963, 2147483648
    %v1173 = vor.u32 1.1754944e-38, %v1172
    %v1174 = vsel %vm1171, %v1173, %v1169
    %v1175 = vmul.f32 1.0, %v1174
    %v1176 = vrcp.pop %v964
    %v1177 = vmul.f32 %v964, %v1176
    %v1178 = vsub.f32 1.0, %v1177
    %v1179 = vmul.f32 %v1176, %v1178
    %v1180 = vadd.f32 %v1176, %v1179
    %vm1181 = vweird.f32 %v964
    %vm1182 = vweird.f32 %v1176
    %vm1183 = vmor %vm1181, %vm1182
    %v1184 = vsel %vm1183, %v1176, %v1180
    %v1185 = vand.u32 2147483647, %v964
    %vm1186 = vcmp.eq.f32.partialorder %v1185, 8.507059e+37
    %v1187 = vand.u32 %v964, 2147483648
    %v1188 = vor.u32 1.1754944e-38, %v1187
    %v1189 = vsel %vm1186, %v1188, %v1184
    %v1190 = vmul.f32 1.0, %v1189
    %v1191 = vrcp.pop %v965
    %v1192 = vmul.f32 %v965, %v1191
    %v1193 = vsub.f32 1.0, %v1192
    %v1194 = vmul.f32 %v1191, %v1193
    %v1195 = vadd.f32 %v1191, %v1194
    %vm1196 = vweird.f32 %v965
    %vm1197 = vweird.f32 %v1191
    %vm1198 = vmor %vm1196, %vm1197
    %v1199 = vsel %vm1198, %v1191, %v1195
    %v1200 = vand.u32 2147483647, %v965
    %vm1201 = vcmp.eq.f32.partialorder %v1200, 8.507059e+37
    %v1202 = vand.u32 %v965, 2147483648
    %v1203 = vor.u32 1.1754944e-38, %v1202
    %v1204 = vsel %vm1201, %v1203, %v1199
    %v1205 = vmul.f32 1.0, %v1204
    %v1206 = vmul.f32 %v870, %v980
    %v1207 = vmul.f32 %v871, %v995
    %v1208 = vmul.f32 %v872, %v1010
    %v1209 = vmul.f32 %v873, %v1025
    %v1210 = vmul.f32 %v874, %v1040
    %v1211 = vmul.f32 %v875, %v1055
    %v1212 = vmul.f32 %v876, %v1070
    %v1213 = vmul.f32 %v877, %v1085
    %v1214 = vmul.f32 %v878, %v1100
    %v1215 = vmul.f32 %v879, %v1115
    %v1216 = vmul.f32 %v880, %v1130
    %v1217 = vmul.f32 %v881, %v1145
    %v1218 = vmul.f32 %v882, %v1160
    %v1219 = vmul.f32 %v883, %v1175
    %v1220 = vmul.f32 %v884, %v1190
    %v1221 = vmul.f32 %v885, %v1205
    %v1222 = vld [vmem:[#allocation10] sm:$0xff]
    %v1223 = vld [vmem:[#allocation10 + $0x8] sm:$0xff]
    %v1224 = vld [vmem:[#allocation10 + $0x10] sm:$0xff]
    %v1225 = vld [vmem:[#allocation10 + $0x18] sm:$0xff]
    %v1226 = vld [vmem:[#allocation10 + $0x20] sm:$0xff]
    %v1227 = vld [vmem:[#allocation10 + $0x28] sm:$0xff]
    %v1228 = vld [vmem:[#allocation10 + $0x30] sm:$0xff]
    %v1229 = vld [vmem:[#allocation10 + $0x38] sm:$0xff]
    %v1230 = vld [vmem:[#allocation10 + $0x40] sm:$0xff]
    %v1231 = vld [vmem:[#allocation10 + $0x48] sm:$0xff]
    %v1232 = vld [vmem:[#allocation10 + $0x50] sm:$0xff]
    %v1233 = vld [vmem:[#allocation10 + $0x58] sm:$0xff]
    %v1234 = vld [vmem:[#allocation10 + $0x60] sm:$0xff]
    %v1235 = vld [vmem:[#allocation10 + $0x68] sm:$0xff]
    %v1236 = vld [vmem:[#allocation10 + $0x70] sm:$0xff]
    %v1237 = vld [vmem:[#allocation10 + $0x78] sm:$0xff]
    %v1238 = vtanh.pop %v1222
    %v1239 = vtanh.pop %v1223
    %v1240 = vtanh.pop %v1224
    %v1241 = vtanh.pop %v1225
    %v1242 = vtanh.pop %v1226
    %v1243 = vtanh.pop %v1227
    %v1244 = vtanh.pop %v1228
    %v1245 = vtanh.pop %v1229
    %v1246 = vtanh.pop %v1230
    %v1247 = vtanh.pop %v1231
    %v1248 = vtanh.pop %v1232
    %v1249 = vtanh.pop %v1233
    %v1250 = vtanh.pop %v1234
    %v1251 = vtanh.pop %v1235
    %v1252 = vtanh.pop %v1236
    %v1253 = vtanh.pop %v1237
    %v1254 = vld [vmem:[#allocation11] sm:$0xff]
    %v1255 = vld [vmem:[#allocation11 + $0x8] sm:$0xff]
    %v1256 = vld [vmem:[#allocation11 + $0x10] sm:$0xff]
    %v1257 = vld [vmem:[#allocation11 + $0x18] sm:$0xff]
    %v1258 = vld [vmem:[#allocation11 + $0x20] sm:$0xff]
    %v1259 = vld [vmem:[#allocation11 + $0x28] sm:$0xff]
    %v1260 = vld [vmem:[#allocation11 + $0x30] sm:$0xff]
    %v1261 = vld [vmem:[#allocation11 + $0x38] sm:$0xff]
    %v1262 = vld [vmem:[#allocation11 + $0x40] sm:$0xff]
    %v1263 = vld [vmem:[#allocation11 + $0x48] sm:$0xff]
    %v1264 = vld [vmem:[#allocation11 + $0x50] sm:$0xff]
    %v1265 = vld [vmem:[#allocation11 + $0x58] sm:$0xff]
    %v1266 = vld [vmem:[#allocation11 + $0x60] sm:$0xff]
    %v1267 = vld [vmem:[#allocation11 + $0x68] sm:$0xff]
    %v1268 = vld [vmem:[#allocation11 + $0x70] sm:$0xff]
    %v1269 = vld [vmem:[#allocation11 + $0x78] sm:$0xff]
    %v1270 = vxor.u32 %v1254, 2147483648
    %v1271 = vxor.u32 %v1255, 2147483648
    %v1272 = vxor.u32 %v1256, 2147483648
    %v1273 = vxor.u32 %v1257, 2147483648
    %v1274 = vxor.u32 %v1258, 2147483648
    %v1275 = vxor.u32 %v1259, 2147483648
    %v1276 = vxor.u32 %v1260, 2147483648
    %v1277 = vxor.u32 %v1261, 2147483648
    %v1278 = vxor.u32 %v1262, 2147483648
    %v1279 = vxor.u32 %v1263, 2147483648
    %v1280 = vxor.u32 %v1264, 2147483648
    %v1281 = vxor.u32 %v1265, 2147483648
    %v1282 = vxor.u32 %v1266, 2147483648
    %v1283 = vxor.u32 %v1267, 2147483648
    %v1284 = vxor.u32 %v1268, 2147483648
    %v1285 = vxor.u32 %v1269, 2147483648
    %v1286 = vmul.f32 %v1270, 1.442695
    %v1287 = vpow.pop %v1286
    %v1288 = vmul.f32 %v1271, 1.442695
    %v1289 = vpow.pop %v1288
    %v1290 = vmul.f32 %v1272, 1.442695
    %v1291 = vpow.pop %v1290
    %v1292 = vmul.f32 %v1273, 1.442695
    %v1293 = vpow.pop %v1292
    %v1294 = vmul.f32 %v1274, 1.442695
    %v1295 = vpow.pop %v1294
    %v1296 = vmul.f32 %v1275, 1.442695
    %v1297 = vpow.pop %v1296
    %v1298 = vmul.f32 %v1276, 1.442695
    %v1299 = vpow.pop %v1298
    %v1300 = vmul.f32 %v1277, 1.442695
    %v1301 = vpow.pop %v1300
    %v1302 = vmul.f32 %v1278, 1.442695
    %v1303 = vpow.pop %v1302
    %v1304 = vmul.f32 %v1279, 1.442695
    %v1305 = vpow.pop %v1304
    %v1306 = vmul.f32 %v1280, 1.442695
    %v1307 = vpow.pop %v1306
    %v1308 = vmul.f32 %v1281, 1.442695
    %v1309 = vpow.pop %v1308
    %v1310 = vmul.f32 %v1282, 1.442695
    %v1311 = vpow.pop %v1310
    %v1312 = vmul.f32 %v1283, 1.442695
    %v1313 = vpow.pop %v1312
    %v1314 = vmul.f32 %v1284, 1.442695
    %v1315 = vpow.pop %v1314
    %v1316 = vmul.f32 %v1285, 1.442695
    %v1317 = vpow.pop %v1316
    %v1318 = vadd.f32 %v1287, 1.0
    %v1319 = vadd.f32 %v1289, 1.0
    %v1320 = vadd.f32 %v1291, 1.0
    %v1321 = vadd.f32 %v1293, 1.0
    %v1322 = vadd.f32 %v1295, 1.0
    %v1323 = vadd.f32 %v1297, 1.0
    %v1324 = vadd.f32 %v1299, 1.0
    %v1325 = vadd.f32 %v1301, 1.0
    %v1326 = vadd.f32 %v1303, 1.0
    %v1327 = vadd.f32 %v1305, 1.0
    %v1328 = vadd.f32 %v1307, 1.0
    %v1329 = vadd.f32 %v1309, 1.0
    %v1330 = vadd.f32 %v1311, 1.0
    %v1331 = vadd.f32 %v1313, 1.0
    %v1332 = vadd.f32 %v1315, 1.0
    %v1333 = vadd.f32 %v1317, 1.0
    %v1334 = vrcp.pop %v1318
    %v1335 = vmul.f32 %v1318, %v1334
    %v1336 = vsub.f32 1.0, %v1335
    %v1337 = vmul.f32 %v1334, %v1336
    %v1338 = vadd.f32 %v1334, %v1337
    %vm1339 = vweird.f32 %v1318
    %vm1340 = vweird.f32 %v1334
    %vm1341 = vmor %vm1339, %vm1340
    %v1342 = vsel %vm1341, %v1334, %v1338
    %v1343 = vand.u32 2147483647, %v1318
    %vm1344 = vcmp.eq.f32.partialorder %v1343, 8.507059e+37
    %v1345 = vand.u32 %v1318, 2147483648
    %v1346 = vor.u32 1.1754944e-38, %v1345
    %v1347 = vsel %vm1344, %v1346, %v1342
    %v1348 = vmul.f32 1.0, %v1347
    %v1349 = vrcp.pop %v1319
    %v1350 = vmul.f32 %v1319, %v1349
    %v1351 = vsub.f32 1.0, %v1350
    %v1352 = vmul.f32 %v1349, %v1351
    %v1353 = vadd.f32 %v1349, %v1352
    %vm1354 = vweird.f32 %v1319
    %vm1355 = vweird.f32 %v1349
    %vm1356 = vmor %vm1354, %vm1355
    %v1357 = vsel %vm1356, %v1349, %v1353
    %v1358 = vand.u32 2147483647, %v1319
    %vm1359 = vcmp.eq.f32.partialorder %v1358, 8.507059e+37
    %v1360 = vand.u32 %v1319, 2147483648
    %v1361 = vor.u32 1.1754944e-38, %v1360
    %v1362 = vsel %vm1359, %v1361, %v1357
    %v1363 = vmul.f32 1.0, %v1362
    %v1364 = vrcp.pop %v1320
    %v1365 = vmul.f32 %v1320, %v1364
    %v1366 = vsub.f32 1.0, %v1365
    %v1367 = vmul.f32 %v1364, %v1366
    %v1368 = vadd.f32 %v1364, %v1367
    %vm1369 = vweird.f32 %v1320
    %vm1370 = vweird.f32 %v1364
    %vm1371 = vmor %vm1369, %vm1370
    %v1372 = vsel %vm1371, %v1364, %v1368
    %v1373 = vand.u32 2147483647, %v1320
    %vm1374 = vcmp.eq.f32.partialorder %v1373, 8.507059e+37
    %v1375 = vand.u32 %v1320, 2147483648
    %v1376 = vor.u32 1.1754944e-38, %v1375
    %v1377 = vsel %vm1374, %v1376, %v1372
    %v1378 = vmul.f32 1.0, %v1377
    %v1379 = vrcp.pop %v1321
    %v1380 = vmul.f32 %v1321, %v1379
    %v1381 = vsub.f32 1.0, %v1380
    %v1382 = vmul.f32 %v1379, %v1381
    %v1383 = vadd.f32 %v1379, %v1382
    %vm1384 = vweird.f32 %v1321
    %vm1385 = vweird.f32 %v1379
    %vm1386 = vmor %vm1384, %vm1385
    %v1387 = vsel %vm1386, %v1379, %v1383
    %v1388 = vand.u32 2147483647, %v1321
    %vm1389 = vcmp.eq.f32.partialorder %v1388, 8.507059e+37
    %v1390 = vand.u32 %v1321, 2147483648
    %v1391 = vor.u32 1.1754944e-38, %v1390
    %v1392 = vsel %vm1389, %v1391, %v1387
    %v1393 = vmul.f32 1.0, %v1392
    %v1394 = vrcp.pop %v1322
    %v1395 = vmul.f32 %v1322, %v1394
    %v1396 = vsub.f32 1.0, %v1395
    %v1397 = vmul.f32 %v1394, %v1396
    %v1398 = vadd.f32 %v1394, %v1397
    %vm1399 = vweird.f32 %v1322
    %vm1400 = vweird.f32 %v1394
    %vm1401 = vmor %vm1399, %vm1400
    %v1402 = vsel %vm1401, %v1394, %v1398
    %v1403 = vand.u32 2147483647, %v1322
    %vm1404 = vcmp.eq.f32.partialorder %v1403, 8.507059e+37
    %v1405 = vand.u32 %v1322, 2147483648
    %v1406 = vor.u32 1.1754944e-38, %v1405
    %v1407 = vsel %vm1404, %v1406, %v1402
    %v1408 = vmul.f32 1.0, %v1407
    %v1409 = vrcp.pop %v1323
    %v1410 = vmul.f32 %v1323, %v1409
    %v1411 = vsub.f32 1.0, %v1410
    %v1412 = vmul.f32 %v1409, %v1411
    %v1413 = vadd.f32 %v1409, %v1412
    %vm1414 = vweird.f32 %v1323
    %vm1415 = vweird.f32 %v1409
    %vm1416 = vmor %vm1414, %vm1415
    %v1417 = vsel %vm1416, %v1409, %v1413
    %v1418 = vand.u32 2147483647, %v1323
    %vm1419 = vcmp.eq.f32.partialorder %v1418, 8.507059e+37
    %v1420 = vand.u32 %v1323, 2147483648
    %v1421 = vor.u32 1.1754944e-38, %v1420
    %v1422 = vsel %vm1419, %v1421, %v1417
    %v1423 = vmul.f32 1.0, %v1422
    %v1424 = vrcp.pop %v1324
    %v1425 = vmul.f32 %v1324, %v1424
    %v1426 = vsub.f32 1.0, %v1425
    %v1427 = vmul.f32 %v1424, %v1426
    %v1428 = vadd.f32 %v1424, %v1427
    %vm1429 = vweird.f32 %v1324
    %vm1430 = vweird.f32 %v1424
    %vm1431 = vmor %vm1429, %vm1430
    %v1432 = vsel %vm1431, %v1424, %v1428
    %v1433 = vand.u32 2147483647, %v1324
    %vm1434 = vcmp.eq.f32.partialorder %v1433, 8.507059e+37
    %v1435 = vand.u32 %v1324, 2147483648
    %v1436 = vor.u32 1.1754944e-38, %v1435
    %v1437 = vsel %vm1434, %v1436, %v1432
    %v1438 = vmul.f32 1.0, %v1437
    %v1439 = vrcp.pop %v1325
    %v1440 = vmul.f32 %v1325, %v1439
    %v1441 = vsub.f32 1.0, %v1440
    %v1442 = vmul.f32 %v1439, %v1441
    %v1443 = vadd.f32 %v1439, %v1442
    %vm1444 = vweird.f32 %v1325
    %vm1445 = vweird.f32 %v1439
    %vm1446 = vmor %vm1444, %vm1445
    %v1447 = vsel %vm1446, %v1439, %v1443
    %v1448 = vand.u32 2147483647, %v1325
    %vm1449 = vcmp.eq.f32.partialorder %v1448, 8.507059e+37
    %v1450 = vand.u32 %v1325, 2147483648
    %v1451 = vor.u32 1.1754944e-38, %v1450
    %v1452 = vsel %vm1449, %v1451, %v1447
    %v1453 = vmul.f32 1.0, %v1452
    %v1454 = vrcp.pop %v1326
    %v1455 = vmul.f32 %v1326, %v1454
    %v1456 = vsub.f32 1.0, %v1455
    %v1457 = vmul.f32 %v1454, %v1456
    %v1458 = vadd.f32 %v1454, %v1457
    %vm1459 = vweird.f32 %v1326
    %vm1460 = vweird.f32 %v1454
    %vm1461 = vmor %vm1459, %vm1460
    %v1462 = vsel %vm1461, %v1454, %v1458
    %v1463 = vand.u32 2147483647, %v1326
    %vm1464 = vcmp.eq.f32.partialorder %v1463, 8.507059e+37
    %v1465 = vand.u32 %v1326, 2147483648
    %v1466 = vor.u32 1.1754944e-38, %v1465
    %v1467 = vsel %vm1464, %v1466, %v1462
    %v1468 = vmul.f32 1.0, %v1467
    %v1469 = vrcp.pop %v1327
    %v1470 = vmul.f32 %v1327, %v1469
    %v1471 = vsub.f32 1.0, %v1470
    %v1472 = vmul.f32 %v1469, %v1471
    %v1473 = vadd.f32 %v1469, %v1472
    %vm1474 = vweird.f32 %v1327
    %vm1475 = vweird.f32 %v1469
    %vm1476 = vmor %vm1474, %vm1475
    %v1477 = vsel %vm1476, %v1469, %v1473
    %v1478 = vand.u32 2147483647, %v1327
    %vm1479 = vcmp.eq.f32.partialorder %v1478, 8.507059e+37
    %v1480 = vand.u32 %v1327, 2147483648
    %v1481 = vor.u32 1.1754944e-38, %v1480
    %v1482 = vsel %vm1479, %v1481, %v1477
    %v1483 = vmul.f32 1.0, %v1482
    %v1484 = vrcp.pop %v1328
    %v1485 = vmul.f32 %v1328, %v1484
    %v1486 = vsub.f32 1.0, %v1485
    %v1487 = vmul.f32 %v1484, %v1486
    %v1488 = vadd.f32 %v1484, %v1487
    %vm1489 = vweird.f32 %v1328
    %vm1490 = vweird.f32 %v1484
    %vm1491 = vmor %vm1489, %vm1490
    %v1492 = vsel %vm1491, %v1484, %v1488
    %v1493 = vand.u32 2147483647, %v1328
    %vm1494 = vcmp.eq.f32.partialorder %v1493, 8.507059e+37
    %v1495 = vand.u32 %v1328, 2147483648
    %v1496 = vor.u32 1.1754944e-38, %v1495
    %v1497 = vsel %vm1494, %v1496, %v1492
    %v1498 = vmul.f32 1.0, %v1497
    %v1499 = vrcp.pop %v1329
    %v1500 = vmul.f32 %v1329, %v1499
    %v1501 = vsub.f32 1.0, %v1500
    %v1502 = vmul.f32 %v1499, %v1501
    %v1503 = vadd.f32 %v1499, %v1502
    %vm1504 = vweird.f32 %v1329
    %vm1505 = vweird.f32 %v1499
    %vm1506 = vmor %vm1504, %vm1505
    %v1507 = vsel %vm1506, %v1499, %v1503
    %v1508 = vand.u32 2147483647, %v1329
    %vm1509 = vcmp.eq.f32.partialorder %v1508, 8.507059e+37
    %v1510 = vand.u32 %v1329, 2147483648
    %v1511 = vor.u32 1.1754944e-38, %v1510
    %v1512 = vsel %vm1509, %v1511, %v1507
    %v1513 = vmul.f32 1.0, %v1512
    %v1514 = vrcp.pop %v1330
    %v1515 = vmul.f32 %v1330, %v1514
    %v1516 = vsub.f32 1.0, %v1515
    %v1517 = vmul.f32 %v1514, %v1516
    %v1518 = vadd.f32 %v1514, %v1517
    %vm1519 = vweird.f32 %v1330
    %vm1520 = vweird.f32 %v1514
    %vm1521 = vmor %vm1519, %vm1520
    %v1522 = vsel %vm1521, %v1514, %v1518
    %v1523 = vand.u32 2147483647, %v1330
    %vm1524 = vcmp.eq.f32.partialorder %v1523, 8.507059e+37
    %v1525 = vand.u32 %v1330, 2147483648
    %v1526 = vor.u32 1.1754944e-38, %v1525
    %v1527 = vsel %vm1524, %v1526, %v1522
    %v1528 = vmul.f32 1.0, %v1527
    %v1529 = vrcp.pop %v1331
    %v1530 = vmul.f32 %v1331, %v1529
    %v1531 = vsub.f32 1.0, %v1530
    %v1532 = vmul.f32 %v1529, %v1531
    %v1533 = vadd.f32 %v1529, %v1532
    %vm1534 = vweird.f32 %v1331
    %vm1535 = vweird.f32 %v1529
    %vm1536 = vmor %vm1534, %vm1535
    %v1537 = vsel %vm1536, %v1529, %v1533
    %v1538 = vand.u32 2147483647, %v1331
    %vm1539 = vcmp.eq.f32.partialorder %v1538, 8.507059e+37
    %v1540 = vand.u32 %v1331, 2147483648
    %v1541 = vor.u32 1.1754944e-38, %v1540
    %v1542 = vsel %vm1539, %v1541, %v1537
    %v1543 = vmul.f32 1.0, %v1542
    %v1544 = vrcp.pop %v1332
    %v1545 = vmul.f32 %v1332, %v1544
    %v1546 = vsub.f32 1.0, %v1545
    %v1547 = vmul.f32 %v1544, %v1546
    %v1548 = vadd.f32 %v1544, %v1547
    %vm1549 = vweird.f32 %v1332
    %vm1550 = vweird.f32 %v1544
    %vm1551 = vmor %vm1549, %vm1550
    %v1552 = vsel %vm1551, %v1544, %v1548
    %v1553 = vand.u32 2147483647, %v1332
    %vm1554 = vcmp.eq.f32.partialorder %v1553, 8.507059e+37
    %v1555 = vand.u32 %v1332, 2147483648
    %v1556 = vor.u32 1.1754944e-38, %v1555
    %v1557 = vsel %vm1554, %v1556, %v1552
    %v1558 = vmul.f32 1.0, %v1557
    %v1559 = vrcp.pop %v1333
    %v1560 = vmul.f32 %v1333, %v1559
    %v1561 = vsub.f32 1.0, %v1560
    %v1562 = vmul.f32 %v1559, %v1561
    %v1563 = vadd.f32 %v1559, %v1562
    %vm1564 = vweird.f32 %v1333
    %vm1565 = vweird.f32 %v1559
    %vm1566 = vmor %vm1564, %vm1565
    %v1567 = vsel %vm1566, %v1559, %v1563
    %v1568 = vand.u32 2147483647, %v1333
    %vm1569 = vcmp.eq.f32.partialorder %v1568, 8.507059e+37
    %v1570 = vand.u32 %v1333, 2147483648
    %v1571 = vor.u32 1.1754944e-38, %v1570
    %v1572 = vsel %vm1569, %v1571, %v1567
    %v1573 = vmul.f32 1.0, %v1572
    %v1574 = vmul.f32 %v1238, %v1348
    %v1575 = vmul.f32 %v1239, %v1363
    %v1576 = vmul.f32 %v1240, %v1378
    %v1577 = vmul.f32 %v1241, %v1393
    %v1578 = vmul.f32 %v1242, %v1408
    %v1579 = vmul.f32 %v1243, %v1423
    %v1580 = vmul.f32 %v1244, %v1438
    %v1581 = vmul.f32 %v1245, %v1453
    %v1582 = vmul.f32 %v1246, %v1468
    %v1583 = vmul.f32 %v1247, %v1483
    %v1584 = vmul.f32 %v1248, %v1498
    %v1585 = vmul.f32 %v1249, %v1513
    %v1586 = vmul.f32 %v1250, %v1528
    %v1587 = vmul.f32 %v1251, %v1543
    %v1588 = vmul.f32 %v1252, %v1558
    %v1589 = vmul.f32 %v1253, %v1573
    %1590 = vxpose.xlu0.b32.start [1/16] %v822, 128
    %1591 = vxpose.xlu0.b32.cont [2/16] %v824, 128
    %1592 = vxpose.xlu0.b32.cont [3/16] %v826, 128
    %1593 = vxpose.xlu0.b32.cont [4/16] %v828, 128
    %1594 = vxpose.xlu0.b32.cont [5/16] %v830, 128
    %1595 = vxpose.xlu0.b32.cont [6/16] %v832, 128
    %1596 = vxpose.xlu0.b32.cont [7/16] %v834, 128
    %1597 = vxpose.xlu0.b32.cont [8/16] %v836, 128
    %1598 = vxpose.xlu0.b32.cont [9/16] %v838, 128
    %1599 = vxpose.xlu0.b32.cont [10/16] %v840, 128
    %1600 = vxpose.xlu0.b32.cont [11/16] %v842, 128
    %1601 = vxpose.xlu0.b32.cont [12/16] %v844, 128
    %1602 = vxpose.xlu0.b32.cont [13/16] %v846, 128
    %1603 = vxpose.xlu0.b32.cont [14/16] %v848, 128
    %1604 = vxpose.xlu0.b32.cont [15/16] %v850, 128
    %1605 = vxpose.xlu0.b32.end [16/16] %v852, 128
    %v1606 = vpop.trf.xlu0
    %v1607 = vpop.trf.xlu0
    %v1608 = vpop.trf.xlu0
    %v1609 = vpop.trf.xlu0
    %v1610 = vpop.trf.xlu0
    %v1611 = vpop.trf.xlu0
    %v1612 = vpop.trf.xlu0
    %v1613 = vpop.trf.xlu0
    %v1614 = vpop.trf.xlu0
    %v1615 = vpop.trf.xlu0
    %v1616 = vpop.trf.xlu0
    %v1617 = vpop.trf.xlu0
    %v1618 = vpop.trf.xlu0
    %v1619 = vpop.trf.xlu0
    %v1620 = vpop.trf.xlu0
    %v1621 = vpop.trf.xlu0
    %1622 = vxpose.xlu0.b32.start [1/16] %v823, 128
    %1623 = vxpose.xlu0.b32.cont [2/16] %v825, 128
    %1624 = vxpose.xlu0.b32.cont [3/16] %v827, 128
    %1625 = vxpose.xlu0.b32.cont [4/16] %v829, 128
    %1626 = vxpose.xlu0.b32.cont [5/16] %v831, 128
    %1627 = vxpose.xlu0.b32.cont [6/16] %v833, 128
    %1628 = vxpose.xlu0.b32.cont [7/16] %v835, 128
    %1629 = vxpose.xlu0.b32.cont [8/16] %v837, 128
    %1630 = vxpose.xlu0.b32.cont [9/16] %v839, 128
    %1631 = vxpose.xlu0.b32.cont [10/16] %v841, 128
    %1632 = vxpose.xlu0.b32.cont [11/16] %v843, 128
    %1633 = vxpose.xlu0.b32.cont [12/16] %v845, 128
    %1634 = vxpose.xlu0.b32.cont [13/16] %v847, 128
    %1635 = vxpose.xlu0.b32.cont [14/16] %v849, 128
    %1636 = vxpose.xlu0.b32.cont [15/16] %v851, 128
    %1637 = vxpose.xlu0.b32.end [16/16] %v853, 128
    %v1638 = vpop.trf.xlu0
    %v1639 = vpop.trf.xlu0
    %v1640 = vpop.trf.xlu0
    %v1641 = vpop.trf.xlu0
    %v1642 = vpop.trf.xlu0
    %v1643 = vpop.trf.xlu0
    %v1644 = vpop.trf.xlu0
    %v1645 = vpop.trf.xlu0
    %v1646 = vpop.trf.xlu0
    %v1647 = vpop.trf.xlu0
    %v1648 = vpop.trf.xlu0
    %v1649 = vpop.trf.xlu0
    %v1650 = vpop.trf.xlu0
    %v1651 = vpop.trf.xlu0
    %v1652 = vpop.trf.xlu0
    %v1653 = vpop.trf.xlu0
    %v1654 = vpack.c.bf16 %v1606, %v1606
    %v1655 = vpack.c.bf16 %v1607, %v1607
    %v1656 = vpack.c.bf16 %v1608, %v1608
    %v1657 = vpack.c.bf16 %v1609, %v1609
    %v1658 = vpack.c.bf16 %v1610, %v1610
    %v1659 = vpack.c.bf16 %v1611, %v1611
    %v1660 = vpack.c.bf16 %v1612, %v1612
    %v1661 = vpack.c.bf16 %v1613, %v1613
    %v1662 = vpack.c.bf16 %v1614, %v1614
    %v1663 = vpack.c.bf16 %v1615, %v1615
    %v1664 = vpack.c.bf16 %v1616, %v1616
    %v1665 = vpack.c.bf16 %v1617, %v1617
    %v1666 = vpack.c.bf16 %v1618, %v1618
    %v1667 = vpack.c.bf16 %v1619, %v1619
    %v1668 = vpack.c.bf16 %v1620, %v1620
    %v1669 = vpack.c.bf16 %v1621, %v1621
    %v1670 = vpack.c.bf16 %v1638, %v1638
    %v1671 = vpack.c.bf16 %v1639, %v1639
    %v1672 = vpack.c.bf16 %v1640, %v1640
    %v1673 = vpack.c.bf16 %v1641, %v1641
    %v1674 = vpack.c.bf16 %v1642, %v1642
    %v1675 = vpack.c.bf16 %v1643, %v1643
    %v1676 = vpack.c.bf16 %v1644, %v1644
    %v1677 = vpack.c.bf16 %v1645, %v1645
    %v1678 = vpack.c.bf16 %v1646, %v1646
    %v1679 = vpack.c.bf16 %v1647, %v1647
    %v1680 = vpack.c.bf16 %v1648, %v1648
    %v1681 = vpack.c.bf16 %v1649, %v1649
    %v1682 = vpack.c.bf16 %v1650, %v1650
    %v1683 = vpack.c.bf16 %v1651, %v1651
    %v1684 = vpack.c.bf16 %v1652, %v1652
    %v1685 = vpack.c.bf16 %v1653, %v1653
    %1686 = vst [vmem:[#allocation13] sm:$0xf] %v1654
    %1687 = vst [vmem:[#allocation13 + $0x4] sm:$0xf] %v1655
    %1688 = vst [vmem:[#allocation13 + $0x8] sm:$0xf] %v1656
    %1689 = vst [vmem:[#allocation13 + $0xc] sm:$0xf] %v1657
    %1690 = vst [vmem:[#allocation13 + $0x10] sm:$0xf] %v1658
    %1691 = vst [vmem:[#allocation13 + $0x14] sm:$0xf] %v1659
    %1692 = vst [vmem:[#allocation13 + $0x18] sm:$0xf] %v1660
    %1693 = vst [vmem:[#allocation13 + $0x1c] sm:$0xf] %v1661
    %1694 = vst [vmem:[#allocation13 + $0x20] sm:$0xf] %v1662
    %1695 = vst [vmem:[#allocation13 + $0x24] sm:$0xf] %v1663
    %1696 = vst [vmem:[#allocation13 + $0x28] sm:$0xf] %v1664
    %1697 = vst [vmem:[#allocation13 + $0x2c] sm:$0xf] %v1665
    %1698 = vst [vmem:[#allocation13 + $0x30] sm:$0xf] %v1666
    %1699 = vst [vmem:[#allocation13 + $0x34] sm:$0xf] %v1667
    %1700 = vst [vmem:[#allocation13 + $0x38] sm:$0xf] %v1668
    %1701 = vst [vmem:[#allocation13 + $0x3c] sm:$0xf] %v1669
    %1702 = vst [vmem:[#allocation13 + $0x40] sm:$0xf] %v1670
    %1703 = vst [vmem:[#allocation13 + $0x44] sm:$0xf] %v1671
    %1704 = vst [vmem:[#allocation13 + $0x48] sm:$0xf] %v1672
    %1705 = vst [vmem:[#allocation13 + $0x4c] sm:$0xf] %v1673
    %1706 = vst [vmem:[#allocation13 + $0x50] sm:$0xf] %v1674
    %1707 = vst [vmem:[#allocation13 + $0x54] sm:$0xf] %v1675
    %1708 = vst [vmem:[#allocation13 + $0x58] sm:$0xf] %v1676
    %1709 = vst [vmem:[#allocation13 + $0x5c] sm:$0xf] %v1677
    %1710 = vst [vmem:[#allocation13 + $0x60] sm:$0xf] %v1678
    %1711 = vst [vmem:[#allocation13 + $0x64] sm:$0xf] %v1679
    %1712 = vst [vmem:[#allocation13 + $0x68] sm:$0xf] %v1680
    %1713 = vst [vmem:[#allocation13 + $0x6c] sm:$0xf] %v1681
    %1714 = vst [vmem:[#allocation13 + $0x70] sm:$0xf] %v1682
    %1715 = vst [vmem:[#allocation13 + $0x74] sm:$0xf] %v1683
    %1716 = vst [vmem:[#allocation13 + $0x78] sm:$0xf] %v1684
    %1717 = vst [vmem:[#allocation13 + $0x7c] sm:$0xf] %v1685
    %1718 = vxpose.xlu0.b32.start [1/16] %v1206, 128
    %1719 = vxpose.xlu0.b32.cont [2/16] %v1207, 128
    %1720 = vxpose.xlu0.b32.cont [3/16] %v1208, 128
    %1721 = vxpose.xlu0.b32.cont [4/16] %v1209, 128
    %1722 = vxpose.xlu0.b32.cont [5/16] %v1210, 128
    %1723 = vxpose.xlu0.b32.cont [6/16] %v1211, 128
    %1724 = vxpose.xlu0.b32.cont [7/16] %v1212, 128
    %1725 = vxpose.xlu0.b32.cont [8/16] %v1213, 128
    %1726 = vxpose.xlu0.b32.cont [9/16] %v1214, 128
    %1727 = vxpose.xlu0.b32.cont [10/16] %v1215, 128
    %1728 = vxpose.xlu0.b32.cont [11/16] %v1216, 128
    %1729 = vxpose.xlu0.b32.cont [12/16] %v1217, 128
    %1730 = vxpose.xlu0.b32.cont [13/16] %v1218, 128
    %1731 = vxpose.xlu0.b32.cont [14/16] %v1219, 128
    %1732 = vxpose.xlu0.b32.cont [15/16] %v1220, 128
    %1733 = vxpose.xlu0.b32.end [16/16] %v1221, 128
    %v1734 = vpop.trf.xlu0
    %v1735 = vpop.trf.xlu0
    %v1736 = vpop.trf.xlu0
    %v1737 = vpop.trf.xlu0
    %v1738 = vpop.trf.xlu0
    %v1739 = vpop.trf.xlu0
    %v1740 = vpop.trf.xlu0
    %v1741 = vpop.trf.xlu0
    %v1742 = vpop.trf.xlu0
    %v1743 = vpop.trf.xlu0
    %v1744 = vpop.trf.xlu0
    %v1745 = vpop.trf.xlu0
    %v1746 = vpop.trf.xlu0
    %v1747 = vpop.trf.xlu0
    %v1748 = vpop.trf.xlu0
    %v1749 = vpop.trf.xlu0
    %v1750 = vpack.c.bf16 %v1734, %v1734
    %v1751 = vpack.c.bf16 %v1735, %v1735
    %v1752 = vpack.c.bf16 %v1736, %v1736
    %v1753 = vpack.c.bf16 %v1737, %v1737
    %v1754 = vpack.c.bf16 %v1738, %v1738
    %v1755 = vpack.c.bf16 %v1739, %v1739
    %v1756 = vpack.c.bf16 %v1740, %v1740
    %v1757 = vpack.c.bf16 %v1741, %v1741
    %v1758 = vpack.c.bf16 %v1742, %v1742
    %v1759 = vpack.c.bf16 %v1743, %v1743
    %v1760 = vpack.c.bf16 %v1744, %v1744
    %v1761 = vpack.c.bf16 %v1745, %v1745
    %v1762 = vpack.c.bf16 %v1746, %v1746
    %v1763 = vpack.c.bf16 %v1747, %v1747
    %v1764 = vpack.c.bf16 %v1748, %v1748
    %v1765 = vpack.c.bf16 %v1749, %v1749
    %1766 = vst [vmem:[#allocation13 + $0x80] sm:$0xf] %v1750
    %1767 = vst [vmem:[#allocation13 + $0x84] sm:$0xf] %v1751
    %1768 = vst [vmem:[#allocation13 + $0x88] sm:$0xf] %v1752
    %1769 = vst [vmem:[#allocation13 + $0x8c] sm:$0xf] %v1753
    %1770 = vst [vmem:[#allocation13 + $0x90] sm:$0xf] %v1754
    %1771 = vst [vmem:[#allocation13 + $0x94] sm:$0xf] %v1755
    %1772 = vst [vmem:[#allocation13 + $0x98] sm:$0xf] %v1756
    %1773 = vst [vmem:[#allocation13 + $0x9c] sm:$0xf] %v1757
    %1774 = vst [vmem:[#allocation13 + $0xa0] sm:$0xf] %v1758
    %1775 = vst [vmem:[#allocation13 + $0xa4] sm:$0xf] %v1759
    %1776 = vst [vmem:[#allocation13 + $0xa8] sm:$0xf] %v1760
    %1777 = vst [vmem:[#allocation13 + $0xac] sm:$0xf] %v1761
    %1778 = vst [vmem:[#allocation13 + $0xb0] sm:$0xf] %v1762
    %1779 = vst [vmem:[#allocation13 + $0xb4] sm:$0xf] %v1763
    %1780 = vst [vmem:[#allocation13 + $0xb8] sm:$0xf] %v1764
    %1781 = vst [vmem:[#allocation13 + $0xbc] sm:$0xf] %v1765
    %1782 = vxpose.xlu0.b32.start [1/16] %v1574, 128
    %1783 = vxpose.xlu0.b32.cont [2/16] %v1575, 128
    %1784 = vxpose.xlu0.b32.cont [3/16] %v1576, 128
    %1785 = vxpose.xlu0.b32.cont [4/16] %v1577, 128
    %1786 = vxpose.xlu0.b32.cont [5/16] %v1578, 128
    %1787 = vxpose.xlu0.b32.cont [6/16] %v1579, 128
    %1788 = vxpose.xlu0.b32.cont [7/16] %v1580, 128
    %1789 = vxpose.xlu0.b32.cont [8/16] %v1581, 128
    %1790 = vxpose.xlu0.b32.cont [9/16] %v1582, 128
    %1791 = vxpose.xlu0.b32.cont [10/16] %v1583, 128
    %1792 = vxpose.xlu0.b32.cont [11/16] %v1584, 128
    %1793 = vxpose.xlu0.b32.cont [12/16] %v1585, 128
    %1794 = vxpose.xlu0.b32.cont [13/16] %v1586, 128
    %1795 = vxpose.xlu0.b32.cont [14/16] %v1587, 128
    %1796 = vxpose.xlu0.b32.cont [15/16] %v1588, 128
    %1797 = vxpose.xlu0.b32.end [16/16] %v1589, 128
    %v1798 = vpop.trf.xlu0
    %v1799 = vpop.trf.xlu0
    %v1800 = vpop.trf.xlu0
    %v1801 = vpop.trf.xlu0
    %v1802 = vpop.trf.xlu0
    %v1803 = vpop.trf.xlu0
    %v1804 = vpop.trf.xlu0
    %v1805 = vpop.trf.xlu0
    %v1806 = vpop.trf.xlu0
    %v1807 = vpop.trf.xlu0
    %v1808 = vpop.trf.xlu0
    %v1809 = vpop.trf.xlu0
    %v1810 = vpop.trf.xlu0
    %v1811 = vpop.trf.xlu0
    %v1812 = vpop.trf.xlu0
    %v1813 = vpop.trf.xlu0
    %v1814 = vpack.c.bf16 %v1798, %v1798
    %v1815 = vpack.c.bf16 %v1799, %v1799
    %v1816 = vpack.c.bf16 %v1800, %v1800
    %v1817 = vpack.c.bf16 %v1801, %v1801
    %v1818 = vpack.c.bf16 %v1802, %v1802
    %v1819 = vpack.c.bf16 %v1803, %v1803
    %v1820 = vpack.c.bf16 %v1804, %v1804
    %v1821 = vpack.c.bf16 %v1805, %v1805
    %v1822 = vpack.c.bf16 %v1806, %v1806
    %v1823 = vpack.c.bf16 %v1807, %v1807
    %v1824 = vpack.c.bf16 %v1808, %v1808
    %v1825 = vpack.c.bf16 %v1809, %v1809
    %v1826 = vpack.c.bf16 %v1810, %v1810
    %v1827 = vpack.c.bf16 %v1811, %v1811
    %v1828 = vpack.c.bf16 %v1812, %v1812
    %v1829 = vpack.c.bf16 %v1813, %v1813
    %1830 = vst [vmem:[#allocation13 + $0xc0] sm:$0xf] %v1814
    %1831 = vst [vmem:[#allocation13 + $0xc4] sm:$0xf] %v1815
    %1832 = vst [vmem:[#allocation13 + $0xc8] sm:$0xf] %v1816
    %1833 = vst [vmem:[#allocation13 + $0xcc] sm:$0xf] %v1817
    %1834 = vst [vmem:[#allocation13 + $0xd0] sm:$0xf] %v1818
    %1835 = vst [vmem:[#allocation13 + $0xd4] sm:$0xf] %v1819
    %1836 = vst [vmem:[#allocation13 + $0xd8] sm:$0xf] %v1820
    %1837 = vst [vmem:[#allocation13 + $0xdc] sm:$0xf] %v1821
    %1838 = vst [vmem:[#allocation13 + $0xe0] sm:$0xf] %v1822
    %1839 = vst [vmem:[#allocation13 + $0xe4] sm:$0xf] %v1823
    %1840 = vst [vmem:[#allocation13 + $0xe8] sm:$0xf] %v1824
    %1841 = vst [vmem:[#allocation13 + $0xec] sm:$0xf] %v1825
    %1842 = vst [vmem:[#allocation13 + $0xf0] sm:$0xf] %v1826
    %1843 = vst [vmem:[#allocation13 + $0xf4] sm:$0xf] %v1827
    %1844 = vst [vmem:[#allocation13 + $0xf8] sm:$0xf] %v1828
    %1845 = vst [vmem:[#allocation13 + $0xfc] sm:$0xf] %v1829
    // Predicated region
    $region50: #{tpu_custom_call.1} parent=1 // pred_check
      _
    $region51: #{tpu_custom_call.1} parent=1 // pred_check_branch
      %1847 = sbr.rel (0) target = $region53
    $region52: #{tpu_custom_call.1} parent=1 // pred_region
      %1849 = vsyncadd [#allocation4], 0
      %s1850 = sshll.u32 [#allocation13], 4
      %s1851 = int_to_ptr.vmem [resolvable:$true] %s1850
      %s1852 = sshll.u32 %s6, 4
      %s1853 = int_to_ptr.hbm [resolvable:$true] %s1852
      %1858 = dma.vmem_to_hbm [thread:$0]  %s1851, 4096, %s1853, [#allocation4], 64, 64, 4
    $region53: #{tpu_custom_call.1} parent=1 // pred_fallthru
      _
    // Predicated region
    $region54: #{tpu_custom_call.1} parent=1 // pred_check
      _
    $region55: #{tpu_custom_call.1} parent=1 // pred_check_branch
      %1860 = sbr.rel (0) target = $region57
    $region56: #{tpu_custom_call.1} parent=1 // pred_region
      %1862 = dma.done [#allocation4], 4096
    $region57: #{tpu_custom_call.1} parent=1 // pred_fallthru
      _
    %1863 = vsyncpa [#allocation3], 1
    %1864 = vsyncpa [#allocation6], 1
    %1865 = vsyncpa [#allocation9], 1
    %1866 = vsyncpa [#allocation12], 1
    %1867 = vsyncpa [#allocation4], 1

</llo_original>
